<compile_context>
chip_gen: v5e
topology: v5e:2x2
jax: 0.10.0
libtpu: 0.0.40
codegen_flags: <defaults>
</compile_context>

<pallas_src>
import jax
import jax.numpy as jnp
from jax.experimental import pallas as pl
from jax.experimental.pallas import tpu as pltpu


def _cubic_kernel(x_ref, o_ref):
    x = x_ref[...]
    r = jnp.maximum(x, 0.0)
    o_ref[...] = (1.0 / 6.0) * (r * r * r)


def _cubic_ref(x: jax.Array) -> jax.Array:
    """Plain-JAX reference / fallback path (identical semantics)."""
    r = jnp.maximum(x, 0.0)
    return (1.0 / 6.0) * (r * r * r)


# ~2 MiB per block: in+out, double-buffered -> ~8 MiB VMEM. Safe on v5e's
# 16 MiB scoped-VMEM default and comfortably inside v6e/v7x limits, while
# sitting at the measured ~86%-of-roofline knee for f32 elementwise tiles.
_TARGET_BLOCK_BYTES = 2 << 20
# Keep at least this many grid steps so the software pipeline overlaps DMA
# with compute and v7x's two TensorCores both get blocks.
_MIN_GRID_STEPS = 2


def _sublane_multiple(dtype) -> int:
    """Native sublane packing for the dtype: (8,128) f32, (16,128) bf16, (32,128) i8/fp8."""
    itemsize = jnp.dtype(dtype).itemsize
    if itemsize >= 4:
        return 8
    if itemsize == 2:
        return 16
    return 32


def _choose_plan(n: int, dtype):
    """Pick a padding-free lane-dense 2D factorization (rows, cols, row_tile).

    Returns None if no clean factorization exists (caller falls back to JAX).
    The row tile is a multiple of the dtype's sublane packing and does NOT
    need to divide rows: the caller uses a cdiv grid and Pallas masks the
    ragged last block.
    """
    itemsize = jnp.dtype(dtype).itemsize
    sub = _sublane_multiple(dtype)
    for cols in (4096, 2048, 1024, 512, 256, 128):
        if n % cols:
            continue
        rows = n // cols
        if rows < sub:
            # Too short to tile well at this width; prefer a narrower slab.
            continue
        target_rows = max(sub, _TARGET_BLOCK_BYTES // (cols * itemsize))
        grid_cap = max(sub, rows // _MIN_GRID_STEPS)
        row_tile = min(rows, target_rows, grid_cap)
        row_tile = max(sub, (row_tile // sub) * sub)
        return rows, cols, row_tile
    return None


def cubic(
    x: jax.Array,
    *,
    min_pallas_elems: int = 128 * 1024,
    donate_input: bool = False,
) -> jax.Array:
    """Pallas TPU implementation of Cubic: (1/6) * clamp(x, min=0)**3.

    Small or awkwardly-sized tensors take the fused plain-JAX path (the
    pallas_call launch overhead beats XLA only for >= ~0.5 MiB of data).
    Set donate_input=True if the caller no longer needs x (aliases the output
    onto the input HBM buffer; no extra allocation).
    """
    n = x.size
    plan = _choose_plan(n, x.dtype) if n >= min_pallas_elems else None
    if plan is None:
        return _cubic_ref(x)

    rows, cols, row_tile = plan
    x2d = jnp.reshape(x, (rows, cols))

    out2d = pl.pallas_call(
        _cubic_kernel,
        out_shape=jax.ShapeDtypeStruct((rows, cols), x.dtype),
        grid=(pl.cdiv(rows, row_tile),),
        in_specs=[pl.BlockSpec((row_tile, cols), lambda i: (i, 0))],
        out_specs=pl.BlockSpec((row_tile, cols), lambda i: (i, 0)),
        compiler_params=pltpu.CompilerParams(
            dimension_semantics=("parallel",)
        ),
        input_output_aliases=({0: 0} if donate_input else {}),
    )(x2d)

    return jnp.reshape(out2d, x.shape)


if __name__ == "__main__":
    key = jax.random.PRNGKey(0)
    k1, k2, k3 = jax.random.split(key, 3)

    # 1) Spec-implied small activation (2, 4, 16, 16): below the Pallas
    #    threshold, exercises the fused plain-JAX fallback.
    x_small = jax.random.normal(k1, (2, 4, 16, 16), dtype=jnp.float32)
    y_small = cubic(x_small)
    jax.block_until_ready(y_small)
    assert y_small.shape == x_small.shape and y_small.dtype == x_small.dtype
    assert jnp.allclose(y_small, _cubic_ref(x_small), atol=1e-6, rtol=1e-6)

    # 2) Larger f32 activation: exercises the Pallas path (lane-dense blocks,
    #    grid >= 2 so both v7x TensorCores are fed and the pipeline overlaps).
    x_f32 = jax.random.normal(k2, (4, 32, 64, 64), dtype=jnp.float32)
    y_f32 = cubic(x_f32)
    jax.block_until_ready(y_f32)
    assert y_f32.shape == x_f32.shape and y_f32.dtype == x_f32.dtype
    assert jnp.allclose(y_f32, _cubic_ref(x_f32), atol=1e-5, rtol=1e-5)

    # 3) bf16 with a row count that is not a multiple of the tile: exercises
    #    the cdiv / ragged-last-block path and the 16-sublane bf16 tiling.
    x_bf16 = jax.random.normal(k3, (5, 13, 64, 128), dtype=jnp.bfloat16)
    y_bf16 = cubic(x_bf16)
    jax.block_until_ready(y_bf16)
    assert y_bf16.shape == x_bf16.shape and y_bf16.dtype == x_bf16.dtype
    assert jnp.allclose(
        y_bf16.astype(jnp.float32),
        _cubic_ref(x_bf16).astype(jnp.float32),
        atol=1e-2,
        rtol=5e-2,
    )

    print("KERNEL_OK")
</pallas_src>

<mosaic_0001>
module attributes {stable_mosaic.version = 11 : i64} {
  func.func @_cubic_kernel(%arg0: i32, %arg1: memref<64x4096xf32, #tpu.memory_space<vmem>>, %arg2: memref<64x4096xf32, #tpu.memory_space<vmem>>) attributes {dimension_semantics = [#tpu.dimension_semantics<parallel>], iteration_bounds = array<i64: 2>, scalar_prefetch = 0 : i64, scratch_operands = 0 : i64, tpu.core_type = #tpu.core_type<tc>, window_params = [{transform_indices = @transform_0, window_bounds = array<i64: 64, 4096>}, {transform_indices = @transform_1, window_bounds = array<i64: 64, 4096>}]} {
    %c0 = arith.constant 0 : index
    %c0_0 = arith.constant 0 : index
    %0 = vector.load %arg1[%c0, %c0_0] : memref<64x4096xf32, #tpu.memory_space<vmem>>, vector<64x4096xf32>
    %cst = arith.constant 0.000000e+00 : f32
    %1 = vector.broadcast %cst : f32 to vector<64x4096xf32>
    %2 = arith.maximumf %0, %1 : vector<64x4096xf32>
    %3 = arith.mulf %2, %2 : vector<64x4096xf32>
    %4 = arith.mulf %3, %2 : vector<64x4096xf32>
    %cst_1 = arith.constant 0.166666672 : f32
    %5 = vector.broadcast %cst_1 : f32 to vector<64x4096xf32>
    %6 = arith.mulf %5, %4 : vector<64x4096xf32>
    %c0_2 = arith.constant 0 : index
    %c0_3 = arith.constant 0 : index
    %7 = vector.load %arg2[%c0_2, %c0_3] : memref<64x4096xf32, #tpu.memory_space<vmem>>, vector<64x4096xf32>
    tpu.vector_store %arg2[%c0_2, %c0_3], %6 {strides = array<i32>} : memref<64x4096xf32, #tpu.memory_space<vmem>>, vector<64x4096xf32>,
    return
  }
  func.func @transform_0(%arg0: i32) -> (i32, i32) {
    %c0_i32 = arith.constant 0 : i32
    %c0_i32_0 = arith.constant 0 : i32
    return %arg0, %c0_i32 : i32, i32
  }
  func.func @transform_1(%arg0: i32) -> (i32, i32) {
    %c0_i32 = arith.constant 0 : i32
    %c0_i32_0 = arith.constant 0 : i32
    return %arg0, %c0_i32 : i32, i32
  }
}

</mosaic_0001>

<llo_original>
// kernel: tpu_custom_call.1
$region0: #{tpu_custom_call.1}
  #allocation0 [shape = 'u32[]', space=smem, size = 0x4, offset = 0x4, fixed_abs, tag = 'smem constant byte address 0x4 - core index']
  #allocation1 [shape = 'u32[72,128]{1,0:T(1,128)}', space=vmem, size = 0x9000, scoped, tag = 'internal scratch']
  %s0 = inlined_call_operand.hbm [shape: f32[128,4096], index: 0, kind: input, shape index: {}]
  %s1 = inlined_call_operand.hbm [shape: f32[128,4096], index: 1, kind: output, shape index: {}]
  %s2 = sld [smem:[#allocation0]]
  $region41: #{tpu_custom_call.1} parent=0
    _
  %s4 = ssub.s32 1, %s2
  %s5 = scalar_select 0, %s4, %s2
  $region1: #{tpu_custom_call.1} parent=0
    #allocation2 [shape = 'u8[2097152]{0}', space=vmem, size = 0x200000, scoped, tag = 'input window, operand 0']
    #allocation3 [shape = 's32[2]{0}', space=sflag, size = 0x8, scoped, tag = 'scoped memory for tpu_custom_call.1']
    #allocation4 [shape = 's32[2]{0}', space=sflag, size = 0x8, scoped, tag = 'scoped memory for tpu_custom_call.1']
    #allocation5 [shape = 'u8[2097152]{0}', space=vmem, size = 0x200000, scoped, tag = 'output window, operand 0']
    %6 = vsyncpa [#allocation3], 0
    %s7 = scalar_lea.sflag [#allocation3], 1
    %8 = vsyncpa %s7, 0
    %9 = vsyncpa [#allocation4], 0
    %s10 = scalar_lea.sflag [#allocation4], 1
    %11 = vsyncpa %s10, 0
    loop: start=0, step=1, limit=4
    $region2: #{tpu_custom_call.1} parent=1 // loop_pre_header
      _
    $region3: #{tpu_custom_call.1} parent=1 // loop_header
      %s13 = sphi 0, %s17
      %p14 = scmp.ge.s32.totalorder %s13, 4
      %s23 = sphi 0, %s25
      %s26 = sphi 0, %s23
      %s27 = sphi 0, %s26
      %s43 = sphi 0, %s27
      %s49 = sphi 0, %s51
      %s52 = sphi 0, %s49
      %s53 = sphi 0, %s52
      %s69 = sphi 0, %s53
    $region4: #{tpu_custom_call.1} parent=1 // loop_header_branch
      %16 = sbr.rel (%p14) target = $region8
    $region5: #{tpu_custom_call.1} parent=1 // loop_body
      %s18 = ssub.s32 %s13, 1
      %s19 = ssub.s32 %s13, 2
      %s20 = sadd.s32 %s13, 1
      %s21 = ssub.s32 %s13, %s20
      %p22 = scmp.eq.s32.totalorder %s21, 0
      %s24 = sadd.s32 %s23, 1
      %s25 = scalar_select %p22, %s23, %s24
      %p28 = pneg %p22
      %p29 = scmp.eq.s32.totalorder %s13, 1
      %p30 = por %p28, %p29
      %p31 = scmp.ne.s32.totalorder %s23, %s26
      %p32 = scmp.eq.s32.totalorder %s13, 0
      %p33 = por %p31, %p32
      %p34 = scmp.ne.s32.totalorder %s23, %s26
      %p35 = scmp.eq.s32.totalorder %s18, 1
      %p36 = por %p34, %p35
      %p37 = scmp.ne.s32.totalorder %s26, %s27
      %p38 = scmp.eq.s32.totalorder %s18, 0
      %p39 = por %p37, %p38
      %p40 = scmp.ne.s32.totalorder %s26, %s27
      %p41 = scmp.eq.s32.totalorder %s19, 1
      %p42 = por %p40, %p41
      %p44 = scmp.ne.s32.totalorder %s27, %s43
      %p45 = scmp.eq.s32.totalorder %s19, 0
      %p46 = por %p44, %p45
      %s47 = ssub.s32 %s13, %s20
      %p48 = scmp.eq.s32.totalorder %s47, 0
      %s50 = sadd.s32 %s49, 1
      %s51 = scalar_select %p48, %s49, %s50
      %p54 = pneg %p48
      %p55 = scmp.eq.s32.totalorder %s13, 1
      %p56 = por %p54, %p55
      %p57 = scmp.ne.s32.totalorder %s49, %s52
      %p58 = scmp.eq.s32.totalorder %s13, 0
      %p59 = por %p57, %p58
      %p60 = scmp.ne.s32.totalorder %s49, %s52
      %p61 = scmp.eq.s32.totalorder %s18, 1
      %p62 = por %p60, %p61
      %p63 = scmp.ne.s32.totalorder %s52, %s53
      %p64 = scmp.eq.s32.totalorder %s18, 0
      %p65 = por %p63, %p64
      %p66 = scmp.ne.s32.totalorder %s52, %s53
      %p67 = scmp.eq.s32.totalorder %s19, 1
      %p68 = por %p66, %p67
      %p70 = scmp.ne.s32.totalorder %s53, %s69
      %p71 = scmp.eq.s32.totalorder %s19, 0
      %p72 = por %p70, %p71
      %p73 = scmp.le.s32.totalorder 1, %s13
      %p74 = scmp.lt.s32.totalorder %s13, 3
      %p75 = pnand %p73, %p74
      %p76 = pneg %p75
      // Predicated region
      $region9: #{tpu_custom_call.1} parent=5 // pred_check
        _
      $region10: #{tpu_custom_call.1} parent=5 // pred_check_branch
        %78 = sbr.rel (%p75) target = $region12
      $region11: #{tpu_custom_call.1} parent=5 // pred_region
        %s79 = ssub.s32 %s13, 1
      $region12: #{tpu_custom_call.1} parent=5 // pred_fallthru
        _
      %p80 = scmp.lt.s32.totalorder %s13, 2
      // Predicated region
      $region13: #{tpu_custom_call.1} parent=5 // pred_check
        %p81 = pneg %p80
      $region14: #{tpu_custom_call.1} parent=5 // pred_check_branch
        %83 = sbr.rel (%p81) target = $region16
      $region15: #{tpu_custom_call.1} parent=5 // pred_region
        // Predicated region
        $region17: #{tpu_custom_call.1} parent=15 // pred_check
          %p84 = pneg %p33
        $region18: #{tpu_custom_call.1} parent=15 // pred_check_branch
          %86 = sbr.rel (%p84) target = $region20
        $region19: #{tpu_custom_call.1} parent=15 // pred_region
          %s87 = sand.u32 %s23, 1
          %s88 = scalar_lea.sflag [#allocation3], %s87
          %s89 = sand.u32 %s23, 1
          %s90 = smul.addr %s89, 2048
          %s91 = scalar_lea.vmem [#allocation2], %s90
          %s92 = smul.u32 8, %s13
          %94 = vsyncadd %s88, 0
          %s95 = smul.addr %s92, 32
          %s96 = smul.addr %s95, 8
          %s97 = scalar_lea.hbm %s0, %s96
          %s98 = sshll.u32 %s97, 4
          %s99 = int_to_ptr.hbm [resolvable:$true] %s98
          %s100 = sshll.u32 %s91, 4
          %s101 = int_to_ptr.vmem [resolvable:$true] %s100
          %106 = dma.hbm_to_vmem [thread:$0]  %s99, 32768, %s101, %s88, 4096, 4096, 256
        $region20: #{tpu_custom_call.1} parent=15 // pred_fallthru
          _
      $region16: #{tpu_custom_call.1} parent=5 // pred_fallthru
        _
      %p107 = scmp.le.s32.totalorder 1, %s13
      %p108 = scmp.lt.s32.totalorder %s13, 3
      %p109 = pnand %p107, %p108
      %p110 = pneg %p109
      // Predicated region
      $region21: #{tpu_custom_call.1} parent=5 // pred_check
        _
      $region22: #{tpu_custom_call.1} parent=5 // pred_check_branch
        %112 = sbr.rel (%p109) target = $region24
      $region23: #{tpu_custom_call.1} parent=5 // pred_region
        %s113 = ssub.s32 %s13, 1
        %s114 = sand.u32 %s26, 1
        %s115 = scalar_lea.sflag [#allocation3], %s114
        %s116 = sand.u32 %s26, 1
        %s117 = smul.addr %s116, 2048
        %s118 = scalar_lea.vmem [#allocation2], %s117
        // Predicated region
        $region25: #{tpu_custom_call.1} parent=23 // pred_check
          %p119 = pneg %p39
        $region26: #{tpu_custom_call.1} parent=23 // pred_check_branch
          %121 = sbr.rel (%p119) target = $region28
        $region27: #{tpu_custom_call.1} parent=23 // pred_region
          %123 = dma.done %s115, 32768
        $region28: #{tpu_custom_call.1} parent=23 // pred_fallthru
          _
        %s124 = sand.u32 %s26, 1
        %s125 = scalar_lea.sflag [#allocation3], %s124
        %s126 = sand.u32 %s26, 1
        %s127 = smul.addr %s126, 2048
        %s128 = scalar_lea.vmem [#allocation2], %s127
        %p129 = pneg %p39
        %p130 = pneg %p36
        %p131 = pneg %p65
        %p132 = pneg %p62
        %s133 = sand.u32 %s52, 1
        %s134 = scalar_lea.sflag [#allocation4], %s133
        %s135 = sand.u32 %s52, 1
        %s136 = smul.addr %s135, 2048
        %s137 = scalar_lea.vmem [#allocation5], %s136
        %s138 = smul.u32 8, %s18
        %s139 = smul.u32 8, %s18
        %v140 = vld [vmem:[%s118] sm:$0xff]
        %v141 = vld [vmem:[%s118 + $0x8] sm:$0xff]
        %v142 = vld [vmem:[%s118 + $0x10] sm:$0xff]
        %v143 = vld [vmem:[%s118 + $0x18] sm:$0xff]
        %v144 = vld [vmem:[%s118 + $0x20] sm:$0xff]
        %v145 = vld [vmem:[%s118 + $0x28] sm:$0xff]
        %v146 = vld [vmem:[%s118 + $0x30] sm:$0xff]
        %v147 = vld [vmem:[%s118 + $0x38] sm:$0xff]
        %v148 = vld [vmem:[%s118 + $0x40] sm:$0xff]
        %v149 = vld [vmem:[%s118 + $0x48] sm:$0xff]
        %v150 = vld [vmem:[%s118 + $0x50] sm:$0xff]
        %v151 = vld [vmem:[%s118 + $0x58] sm:$0xff]
        %v152 = vld [vmem:[%s118 + $0x60] sm:$0xff]
        %v153 = vld [vmem:[%s118 + $0x68] sm:$0xff]
        %v154 = vld [vmem:[%s118 + $0x70] sm:$0xff]
        %v155 = vld [vmem:[%s118 + $0x78] sm:$0xff]
        %v156 = vld [vmem:[%s118 + $0x80] sm:$0xff]
        %v157 = vld [vmem:[%s118 + $0x88] sm:$0xff]
        %v158 = vld [vmem:[%s118 + $0x90] sm:$0xff]
        %v159 = vld [vmem:[%s118 + $0x98] sm:$0xff]
        %v160 = vld [vmem:[%s118 + $0xa0] sm:$0xff]
        %v161 = vld [vmem:[%s118 + $0xa8] sm:$0xff]
        %v162 = vld [vmem:[%s118 + $0xb0] sm:$0xff]
        %v163 = vld [vmem:[%s118 + $0xb8] sm:$0xff]
        %v164 = vld [vmem:[%s118 + $0xc0] sm:$0xff]
        %v165 = vld [vmem:[%s118 + $0xc8] sm:$0xff]
        %v166 = vld [vmem:[%s118 + $0xd0] sm:$0xff]
        %v167 = vld [vmem:[%s118 + $0xd8] sm:$0xff]
        %v168 = vld [vmem:[%s118 + $0xe0] sm:$0xff]
        %v169 = vld [vmem:[%s118 + $0xe8] sm:$0xff]
        %v170 = vld [vmem:[%s118 + $0xf0] sm:$0xff]
        %v171 = vld [vmem:[%s118 + $0xf8] sm:$0xff]
        %v172 = vld [vmem:[%s118 + $0x100] sm:$0xff]
        %v173 = vld [vmem:[%s118 + $0x108] sm:$0xff]
        %v174 = vld [vmem:[%s118 + $0x110] sm:$0xff]
        %v175 = vld [vmem:[%s118 + $0x118] sm:$0xff]
        %v176 = vld [vmem:[%s118 + $0x120] sm:$0xff]
        %v177 = vld [vmem:[%s118 + $0x128] sm:$0xff]
        %v178 = vld [vmem:[%s118 + $0x130] sm:$0xff]
        %v179 = vld [vmem:[%s118 + $0x138] sm:$0xff]
        %v180 = vld [vmem:[%s118 + $0x140] sm:$0xff]
        %v181 = vld [vmem:[%s118 + $0x148] sm:$0xff]
        %v182 = vld [vmem:[%s118 + $0x150] sm:$0xff]
        %v183 = vld [vmem:[%s118 + $0x158] sm:$0xff]
        %v184 = vld [vmem:[%s118 + $0x160] sm:$0xff]
        %v185 = vld [vmem:[%s118 + $0x168] sm:$0xff]
        %v186 = vld [vmem:[%s118 + $0x170] sm:$0xff]
        %v187 = vld [vmem:[%s118 + $0x178] sm:$0xff]
        %v188 = vld [vmem:[%s118 + $0x180] sm:$0xff]
        %v189 = vld [vmem:[%s118 + $0x188] sm:$0xff]
        %v190 = vld [vmem:[%s118 + $0x190] sm:$0xff]
        %v191 = vld [vmem:[%s118 + $0x198] sm:$0xff]
        %v192 = vld [vmem:[%s118 + $0x1a0] sm:$0xff]
        %v193 = vld [vmem:[%s118 + $0x1a8] sm:$0xff]
        %v194 = vld [vmem:[%s118 + $0x1b0] sm:$0xff]
        %v195 = vld [vmem:[%s118 + $0x1b8] sm:$0xff]
        %v196 = vld [vmem:[%s118 + $0x1c0] sm:$0xff]
        %v197 = vld [vmem:[%s118 + $0x1c8] sm:$0xff]
        %v198 = vld [vmem:[%s118 + $0x1d0] sm:$0xff]
        %v199 = vld [vmem:[%s118 + $0x1d8] sm:$0xff]
        %v200 = vld [vmem:[%s118 + $0x1e0] sm:$0xff]
        %v201 = vld [vmem:[%s118 + $0x1e8] sm:$0xff]
        %v202 = vld [vmem:[%s118 + $0x1f0] sm:$0xff]
        %v203 = vld [vmem:[%s118 + $0x1f8] sm:$0xff]
        %v204 = vld [vmem:[%s118 + $0x200] sm:$0xff]
        %v205 = vld [vmem:[%s118 + $0x208] sm:$0xff]
        %v206 = vld [vmem:[%s118 + $0x210] sm:$0xff]
        %v207 = vld [vmem:[%s118 + $0x218] sm:$0xff]
        %v208 = vld [vmem:[%s118 + $0x220] sm:$0xff]
        %v209 = vld [vmem:[%s118 + $0x228] sm:$0xff]
        %v210 = vld [vmem:[%s118 + $0x230] sm:$0xff]
        %v211 = vld [vmem:[%s118 + $0x238] sm:$0xff]
        %v212 = vld [vmem:[%s118 + $0x240] sm:$0xff]
        %v213 = vld [vmem:[%s118 + $0x248] sm:$0xff]
        %v214 = vld [vmem:[%s118 + $0x250] sm:$0xff]
        %v215 = vld [vmem:[%s118 + $0x258] sm:$0xff]
        %v216 = vld [vmem:[%s118 + $0x260] sm:$0xff]
        %v217 = vld [vmem:[%s118 + $0x268] sm:$0xff]
        %v218 = vld [vmem:[%s118 + $0x270] sm:$0xff]
        %v219 = vld [vmem:[%s118 + $0x278] sm:$0xff]
        %v220 = vld [vmem:[%s118 + $0x280] sm:$0xff]
        %v221 = vld [vmem:[%s118 + $0x288] sm:$0xff]
        %v222 = vld [vmem:[%s118 + $0x290] sm:$0xff]
        %v223 = vld [vmem:[%s118 + $0x298] sm:$0xff]
        %v224 = vld [vmem:[%s118 + $0x2a0] sm:$0xff]
        %v225 = vld [vmem:[%s118 + $0x2a8] sm:$0xff]
        %v226 = vld [vmem:[%s118 + $0x2b0] sm:$0xff]
        %v227 = vld [vmem:[%s118 + $0x2b8] sm:$0xff]
        %v228 = vld [vmem:[%s118 + $0x2c0] sm:$0xff]
        %v229 = vld [vmem:[%s118 + $0x2c8] sm:$0xff]
        %v230 = vld [vmem:[%s118 + $0x2d0] sm:$0xff]
        %v231 = vld [vmem:[%s118 + $0x2d8] sm:$0xff]
        %v232 = vld [vmem:[%s118 + $0x2e0] sm:$0xff]
        %v233 = vld [vmem:[%s118 + $0x2e8] sm:$0xff]
        %v234 = vld [vmem:[%s118 + $0x2f0] sm:$0xff]
        %v235 = vld [vmem:[%s118 + $0x2f8] sm:$0xff]
        %v236 = vld [vmem:[%s118 + $0x300] sm:$0xff]
        %v237 = vld [vmem:[%s118 + $0x308] sm:$0xff]
        %v238 = vld [vmem:[%s118 + $0x310] sm:$0xff]
        %v239 = vld [vmem:[%s118 + $0x318] sm:$0xff]
        %v240 = vld [vmem:[%s118 + $0x320] sm:$0xff]
        %v241 = vld [vmem:[%s118 + $0x328] sm:$0xff]
        %v242 = vld [vmem:[%s118 + $0x330] sm:$0xff]
        %v243 = vld [vmem:[%s118 + $0x338] sm:$0xff]
        %v244 = vld [vmem:[%s118 + $0x340] sm:$0xff]
        %v245 = vld [vmem:[%s118 + $0x348] sm:$0xff]
        %v246 = vld [vmem:[%s118 + $0x350] sm:$0xff]
        %v247 = vld [vmem:[%s118 + $0x358] sm:$0xff]
        %v248 = vld [vmem:[%s118 + $0x360] sm:$0xff]
        %v249 = vld [vmem:[%s118 + $0x368] sm:$0xff]
        %v250 = vld [vmem:[%s118 + $0x370] sm:$0xff]
        %v251 = vld [vmem:[%s118 + $0x378] sm:$0xff]
        %v252 = vld [vmem:[%s118 + $0x380] sm:$0xff]
        %v253 = vld [vmem:[%s118 + $0x388] sm:$0xff]
        %v254 = vld [vmem:[%s118 + $0x390] sm:$0xff]
        %v255 = vld [vmem:[%s118 + $0x398] sm:$0xff]
        %v256 = vld [vmem:[%s118 + $0x3a0] sm:$0xff]
        %v257 = vld [vmem:[%s118 + $0x3a8] sm:$0xff]
        %v258 = vld [vmem:[%s118 + $0x3b0] sm:$0xff]
        %v259 = vld [vmem:[%s118 + $0x3b8] sm:$0xff]
        %v260 = vld [vmem:[%s118 + $0x3c0] sm:$0xff]
        %v261 = vld [vmem:[%s118 + $0x3c8] sm:$0xff]
        %v262 = vld [vmem:[%s118 + $0x3d0] sm:$0xff]
        %v263 = vld [vmem:[%s118 + $0x3d8] sm:$0xff]
        %v264 = vld [vmem:[%s118 + $0x3e0] sm:$0xff]
        %v265 = vld [vmem:[%s118 + $0x3e8] sm:$0xff]
        %v266 = vld [vmem:[%s118 + $0x3f0] sm:$0xff]
        %v267 = vld [vmem:[%s118 + $0x3f8] sm:$0xff]
        %v268 = vld [vmem:[%s118 + $0x400] sm:$0xff]
        %v269 = vld [vmem:[%s118 + $0x408] sm:$0xff]
        %v270 = vld [vmem:[%s118 + $0x410] sm:$0xff]
        %v271 = vld [vmem:[%s118 + $0x418] sm:$0xff]
        %v272 = vld [vmem:[%s118 + $0x420] sm:$0xff]
        %v273 = vld [vmem:[%s118 + $0x428] sm:$0xff]
        %v274 = vld [vmem:[%s118 + $0x430] sm:$0xff]
        %v275 = vld [vmem:[%s118 + $0x438] sm:$0xff]
        %v276 = vld [vmem:[%s118 + $0x440] sm:$0xff]
        %v277 = vld [vmem:[%s118 + $0x448] sm:$0xff]
        %v278 = vld [vmem:[%s118 + $0x450] sm:$0xff]
        %v279 = vld [vmem:[%s118 + $0x458] sm:$0xff]
        %v280 = vld [vmem:[%s118 + $0x460] sm:$0xff]
        %v281 = vld [vmem:[%s118 + $0x468] sm:$0xff]
        %v282 = vld [vmem:[%s118 + $0x470] sm:$0xff]
        %v283 = vld [vmem:[%s118 + $0x478] sm:$0xff]
        %v284 = vld [vmem:[%s118 + $0x480] sm:$0xff]
        %v285 = vld [vmem:[%s118 + $0x488] sm:$0xff]
        %v286 = vld [vmem:[%s118 + $0x490] sm:$0xff]
        %v287 = vld [vmem:[%s118 + $0x498] sm:$0xff]
        %v288 = vld [vmem:[%s118 + $0x4a0] sm:$0xff]
        %v289 = vld [vmem:[%s118 + $0x4a8] sm:$0xff]
        %v290 = vld [vmem:[%s118 + $0x4b0] sm:$0xff]
        %v291 = vld [vmem:[%s118 + $0x4b8] sm:$0xff]
        %v292 = vld [vmem:[%s118 + $0x4c0] sm:$0xff]
        %v293 = vld [vmem:[%s118 + $0x4c8] sm:$0xff]
        %v294 = vld [vmem:[%s118 + $0x4d0] sm:$0xff]
        %v295 = vld [vmem:[%s118 + $0x4d8] sm:$0xff]
        %v296 = vld [vmem:[%s118 + $0x4e0] sm:$0xff]
        %v297 = vld [vmem:[%s118 + $0x4e8] sm:$0xff]
        %v298 = vld [vmem:[%s118 + $0x4f0] sm:$0xff]
        %v299 = vld [vmem:[%s118 + $0x4f8] sm:$0xff]
        %v300 = vld [vmem:[%s118 + $0x500] sm:$0xff]
        %v301 = vld [vmem:[%s118 + $0x508] sm:$0xff]
        %v302 = vld [vmem:[%s118 + $0x510] sm:$0xff]
        %v303 = vld [vmem:[%s118 + $0x518] sm:$0xff]
        %v304 = vld [vmem:[%s118 + $0x520] sm:$0xff]
        %v305 = vld [vmem:[%s118 + $0x528] sm:$0xff]
        %v306 = vld [vmem:[%s118 + $0x530] sm:$0xff]
        %v307 = vld [vmem:[%s118 + $0x538] sm:$0xff]
        %v308 = vld [vmem:[%s118 + $0x540] sm:$0xff]
        %v309 = vld [vmem:[%s118 + $0x548] sm:$0xff]
        %v310 = vld [vmem:[%s118 + $0x550] sm:$0xff]
        %v311 = vld [vmem:[%s118 + $0x558] sm:$0xff]
        %v312 = vld [vmem:[%s118 + $0x560] sm:$0xff]
        %v313 = vld [vmem:[%s118 + $0x568] sm:$0xff]
        %v314 = vld [vmem:[%s118 + $0x570] sm:$0xff]
        %v315 = vld [vmem:[%s118 + $0x578] sm:$0xff]
        %v316 = vld [vmem:[%s118 + $0x580] sm:$0xff]
        %v317 = vld [vmem:[%s118 + $0x588] sm:$0xff]
        %v318 = vld [vmem:[%s118 + $0x590] sm:$0xff]
        %v319 = vld [vmem:[%s118 + $0x598] sm:$0xff]
        %v320 = vld [vmem:[%s118 + $0x5a0] sm:$0xff]
        %v321 = vld [vmem:[%s118 + $0x5a8] sm:$0xff]
        %v322 = vld [vmem:[%s118 + $0x5b0] sm:$0xff]
        %v323 = vld [vmem:[%s118 + $0x5b8] sm:$0xff]
        %v324 = vld [vmem:[%s118 + $0x5c0] sm:$0xff]
        %v325 = vld [vmem:[%s118 + $0x5c8] sm:$0xff]
        %v326 = vld [vmem:[%s118 + $0x5d0] sm:$0xff]
        %v327 = vld [vmem:[%s118 + $0x5d8] sm:$0xff]
        %v328 = vld [vmem:[%s118 + $0x5e0] sm:$0xff]
        %v329 = vld [vmem:[%s118 + $0x5e8] sm:$0xff]
        %v330 = vld [vmem:[%s118 + $0x5f0] sm:$0xff]
        %v331 = vld [vmem:[%s118 + $0x5f8] sm:$0xff]
        %v332 = vld [vmem:[%s118 + $0x600] sm:$0xff]
        %v333 = vld [vmem:[%s118 + $0x608] sm:$0xff]
        %v334 = vld [vmem:[%s118 + $0x610] sm:$0xff]
        %v335 = vld [vmem:[%s118 + $0x618] sm:$0xff]
        %v336 = vld [vmem:[%s118 + $0x620] sm:$0xff]
        %v337 = vld [vmem:[%s118 + $0x628] sm:$0xff]
        %v338 = vld [vmem:[%s118 + $0x630] sm:$0xff]
        %v339 = vld [vmem:[%s118 + $0x638] sm:$0xff]
        %v340 = vld [vmem:[%s118 + $0x640] sm:$0xff]
        %v341 = vld [vmem:[%s118 + $0x648] sm:$0xff]
        %v342 = vld [vmem:[%s118 + $0x650] sm:$0xff]
        %v343 = vld [vmem:[%s118 + $0x658] sm:$0xff]
        %v344 = vld [vmem:[%s118 + $0x660] sm:$0xff]
        %v345 = vld [vmem:[%s118 + $0x668] sm:$0xff]
        %v346 = vld [vmem:[%s118 + $0x670] sm:$0xff]
        %v347 = vld [vmem:[%s118 + $0x678] sm:$0xff]
        %v348 = vld [vmem:[%s118 + $0x680] sm:$0xff]
        %v349 = vld [vmem:[%s118 + $0x688] sm:$0xff]
        %v350 = vld [vmem:[%s118 + $0x690] sm:$0xff]
        %v351 = vld [vmem:[%s118 + $0x698] sm:$0xff]
        %v352 = vld [vmem:[%s118 + $0x6a0] sm:$0xff]
        %v353 = vld [vmem:[%s118 + $0x6a8] sm:$0xff]
        %v354 = vld [vmem:[%s118 + $0x6b0] sm:$0xff]
        %v355 = vld [vmem:[%s118 + $0x6b8] sm:$0xff]
        %v356 = vld [vmem:[%s118 + $0x6c0] sm:$0xff]
        %v357 = vld [vmem:[%s118 + $0x6c8] sm:$0xff]
        %v358 = vld [vmem:[%s118 + $0x6d0] sm:$0xff]
        %v359 = vld [vmem:[%s118 + $0x6d8] sm:$0xff]
        %v360 = vld [vmem:[%s118 + $0x6e0] sm:$0xff]
        %v361 = vld [vmem:[%s118 + $0x6e8] sm:$0xff]
        %v362 = vld [vmem:[%s118 + $0x6f0] sm:$0xff]
        %v363 = vld [vmem:[%s118 + $0x6f8] sm:$0xff]
        %v364 = vld [vmem:[%s118 + $0x700] sm:$0xff]
        %v365 = vld [vmem:[%s118 + $0x708] sm:$0xff]
        %v366 = vld [vmem:[%s118 + $0x710] sm:$0xff]
        %v367 = vld [vmem:[%s118 + $0x718] sm:$0xff]
        %v368 = vld [vmem:[%s118 + $0x720] sm:$0xff]
        %v369 = vld [vmem:[%s118 + $0x728] sm:$0xff]
        %v370 = vld [vmem:[%s118 + $0x730] sm:$0xff]
        %v371 = vld [vmem:[%s118 + $0x738] sm:$0xff]
        %v372 = vld [vmem:[%s118 + $0x740] sm:$0xff]
        %v373 = vld [vmem:[%s118 + $0x748] sm:$0xff]
        %v374 = vld [vmem:[%s118 + $0x750] sm:$0xff]
        %v375 = vld [vmem:[%s118 + $0x758] sm:$0xff]
        %v376 = vld [vmem:[%s118 + $0x760] sm:$0xff]
        %v377 = vld [vmem:[%s118 + $0x768] sm:$0xff]
        %v378 = vld [vmem:[%s118 + $0x770] sm:$0xff]
        %v379 = vld [vmem:[%s118 + $0x778] sm:$0xff]
        %v380 = vld [vmem:[%s118 + $0x780] sm:$0xff]
        %v381 = vld [vmem:[%s118 + $0x788] sm:$0xff]
        %v382 = vld [vmem:[%s118 + $0x790] sm:$0xff]
        %v383 = vld [vmem:[%s118 + $0x798] sm:$0xff]
        %v384 = vld [vmem:[%s118 + $0x7a0] sm:$0xff]
        %v385 = vld [vmem:[%s118 + $0x7a8] sm:$0xff]
        %v386 = vld [vmem:[%s118 + $0x7b0] sm:$0xff]
        %v387 = vld [vmem:[%s118 + $0x7b8] sm:$0xff]
        %v388 = vld [vmem:[%s118 + $0x7c0] sm:$0xff]
        %v389 = vld [vmem:[%s118 + $0x7c8] sm:$0xff]
        %v390 = vld [vmem:[%s118 + $0x7d0] sm:$0xff]
        %v391 = vld [vmem:[%s118 + $0x7d8] sm:$0xff]
        %v392 = vld [vmem:[%s118 + $0x7e0] sm:$0xff]
        %v393 = vld [vmem:[%s118 + $0x7e8] sm:$0xff]
        %v394 = vld [vmem:[%s118 + $0x7f0] sm:$0xff]
        %v395 = vld [vmem:[%s118 + $0x7f8] sm:$0xff]
        %v396 = vmax.f32 %v140, 0.0
        %v397 = vmax.f32 %v141, 0.0
        %v398 = vmax.f32 %v142, 0.0
        %v399 = vmax.f32 %v143, 0.0
        %v400 = vmax.f32 %v144, 0.0
        %v401 = vmax.f32 %v145, 0.0
        %v402 = vmax.f32 %v146, 0.0
        %v403 = vmax.f32 %v147, 0.0
        %v404 = vmax.f32 %v148, 0.0
        %v405 = vmax.f32 %v149, 0.0
        %v406 = vmax.f32 %v150, 0.0
        %v407 = vmax.f32 %v151, 0.0
        %v408 = vmax.f32 %v152, 0.0
        %v409 = vmax.f32 %v153, 0.0
        %v410 = vmax.f32 %v154, 0.0
        %v411 = vmax.f32 %v155, 0.0
        %v412 = vmax.f32 %v156, 0.0
        %v413 = vmax.f32 %v157, 0.0
        %v414 = vmax.f32 %v158, 0.0
        %v415 = vmax.f32 %v159, 0.0
        %v416 = vmax.f32 %v160, 0.0
        %v417 = vmax.f32 %v161, 0.0
        %v418 = vmax.f32 %v162, 0.0
        %v419 = vmax.f32 %v163, 0.0
        %v420 = vmax.f32 %v164, 0.0
        %v421 = vmax.f32 %v165, 0.0
        %v422 = vmax.f32 %v166, 0.0
        %v423 = vmax.f32 %v167, 0.0
        %v424 = vmax.f32 %v168, 0.0
        %v425 = vmax.f32 %v169, 0.0
        %v426 = vmax.f32 %v170, 0.0
        %v427 = vmax.f32 %v171, 0.0
        %v428 = vmax.f32 %v172, 0.0
        %v429 = vmax.f32 %v173, 0.0
        %v430 = vmax.f32 %v174, 0.0
        %v431 = vmax.f32 %v175, 0.0
        %v432 = vmax.f32 %v176, 0.0
        %v433 = vmax.f32 %v177, 0.0
        %v434 = vmax.f32 %v178, 0.0
        %v435 = vmax.f32 %v179, 0.0
        %v436 = vmax.f32 %v180, 0.0
        %v437 = vmax.f32 %v181, 0.0
        %v438 = vmax.f32 %v182, 0.0
        %v439 = vmax.f32 %v183, 0.0
        %v440 = vmax.f32 %v184, 0.0
        %v441 = vmax.f32 %v185, 0.0
        %v442 = vmax.f32 %v186, 0.0
        %v443 = vmax.f32 %v187, 0.0
        %v444 = vmax.f32 %v188, 0.0
        %v445 = vmax.f32 %v189, 0.0
        %v446 = vmax.f32 %v190, 0.0
        %v447 = vmax.f32 %v191, 0.0
        %v448 = vmax.f32 %v192, 0.0
        %v449 = vmax.f32 %v193, 0.0
        %v450 = vmax.f32 %v194, 0.0
        %v451 = vmax.f32 %v195, 0.0
        %v452 = vmax.f32 %v196, 0.0
        %v453 = vmax.f32 %v197, 0.0
        %v454 = vmax.f32 %v198, 0.0
        %v455 = vmax.f32 %v199, 0.0
        %v456 = vmax.f32 %v200, 0.0
        %v457 = vmax.f32 %v201, 0.0
        %v458 = vmax.f32 %v202, 0.0
        %v459 = vmax.f32 %v203, 0.0
        %v460 = vmax.f32 %v204, 0.0
        %v461 = vmax.f32 %v205, 0.0
        %v462 = vmax.f32 %v206, 0.0
        %v463 = vmax.f32 %v207, 0.0
        %v464 = vmax.f32 %v208, 0.0
        %v465 = vmax.f32 %v209, 0.0
        %v466 = vmax.f32 %v210, 0.0
        %v467 = vmax.f32 %v211, 0.0
        %v468 = vmax.f32 %v212, 0.0
        %v469 = vmax.f32 %v213, 0.0
        %v470 = vmax.f32 %v214, 0.0
        %v471 = vmax.f32 %v215, 0.0
        %v472 = vmax.f32 %v216, 0.0
        %v473 = vmax.f32 %v217, 0.0
        %v474 = vmax.f32 %v218, 0.0
        %v475 = vmax.f32 %v219, 0.0
        %v476 = vmax.f32 %v220, 0.0
        %v477 = vmax.f32 %v221, 0.0
        %v478 = vmax.f32 %v222, 0.0
        %v479 = vmax.f32 %v223, 0.0
        %v480 = vmax.f32 %v224, 0.0
        %v481 = vmax.f32 %v225, 0.0
        %v482 = vmax.f32 %v226, 0.0
        %v483 = vmax.f32 %v227, 0.0
        %v484 = vmax.f32 %v228, 0.0
        %v485 = vmax.f32 %v229, 0.0
        %v486 = vmax.f32 %v230, 0.0
        %v487 = vmax.f32 %v231, 0.0
        %v488 = vmax.f32 %v232, 0.0
        %v489 = vmax.f32 %v233, 0.0
        %v490 = vmax.f32 %v234, 0.0
        %v491 = vmax.f32 %v235, 0.0
        %v492 = vmax.f32 %v236, 0.0
        %v493 = vmax.f32 %v237, 0.0
        %v494 = vmax.f32 %v238, 0.0
        %v495 = vmax.f32 %v239, 0.0
        %v496 = vmax.f32 %v240, 0.0
        %v497 = vmax.f32 %v241, 0.0
        %v498 = vmax.f32 %v242, 0.0
        %v499 = vmax.f32 %v243, 0.0
        %v500 = vmax.f32 %v244, 0.0
        %v501 = vmax.f32 %v245, 0.0
        %v502 = vmax.f32 %v246, 0.0
        %v503 = vmax.f32 %v247, 0.0
        %v504 = vmax.f32 %v248, 0.0
        %v505 = vmax.f32 %v249, 0.0
        %v506 = vmax.f32 %v250, 0.0
        %v507 = vmax.f32 %v251, 0.0
        %v508 = vmax.f32 %v252, 0.0
        %v509 = vmax.f32 %v253, 0.0
        %v510 = vmax.f32 %v254, 0.0
        %v511 = vmax.f32 %v255, 0.0
        %v512 = vmax.f32 %v256, 0.0
        %v513 = vmax.f32 %v257, 0.0
        %v514 = vmax.f32 %v258, 0.0
        %v515 = vmax.f32 %v259, 0.0
        %v516 = vmax.f32 %v260, 0.0
        %v517 = vmax.f32 %v261, 0.0
        %v518 = vmax.f32 %v262, 0.0
        %v519 = vmax.f32 %v263, 0.0
        %v520 = vmax.f32 %v264, 0.0
        %v521 = vmax.f32 %v265, 0.0
        %v522 = vmax.f32 %v266, 0.0
        %v523 = vmax.f32 %v267, 0.0
        %v524 = vmax.f32 %v268, 0.0
        %v525 = vmax.f32 %v269, 0.0
        %v526 = vmax.f32 %v270, 0.0
        %v527 = vmax.f32 %v271, 0.0
        %v528 = vmax.f32 %v272, 0.0
        %v529 = vmax.f32 %v273, 0.0
        %v530 = vmax.f32 %v274, 0.0
        %v531 = vmax.f32 %v275, 0.0
        %v532 = vmax.f32 %v276, 0.0
        %v533 = vmax.f32 %v277, 0.0
        %v534 = vmax.f32 %v278, 0.0
        %v535 = vmax.f32 %v279, 0.0
        %v536 = vmax.f32 %v280, 0.0
        %v537 = vmax.f32 %v281, 0.0
        %v538 = vmax.f32 %v282, 0.0
        %v539 = vmax.f32 %v283, 0.0
        %v540 = vmax.f32 %v284, 0.0
        %v541 = vmax.f32 %v285, 0.0
        %v542 = vmax.f32 %v286, 0.0
        %v543 = vmax.f32 %v287, 0.0
        %v544 = vmax.f32 %v288, 0.0
        %v545 = vmax.f32 %v289, 0.0
        %v546 = vmax.f32 %v290, 0.0
        %v547 = vmax.f32 %v291, 0.0
        %v548 = vmax.f32 %v292, 0.0
        %v549 = vmax.f32 %v293, 0.0
        %v550 = vmax.f32 %v294, 0.0
        %v551 = vmax.f32 %v295, 0.0
        %v552 = vmax.f32 %v296, 0.0
        %v553 = vmax.f32 %v297, 0.0
        %v554 = vmax.f32 %v298, 0.0
        %v555 = vmax.f32 %v299, 0.0
        %v556 = vmax.f32 %v300, 0.0
        %v557 = vmax.f32 %v301, 0.0
        %v558 = vmax.f32 %v302, 0.0
        %v559 = vmax.f32 %v303, 0.0
        %v560 = vmax.f32 %v304, 0.0
        %v561 = vmax.f32 %v305, 0.0
        %v562 = vmax.f32 %v306, 0.0
        %v563 = vmax.f32 %v307, 0.0
        %v564 = vmax.f32 %v308, 0.0
        %v565 = vmax.f32 %v309, 0.0
        %v566 = vmax.f32 %v310, 0.0
        %v567 = vmax.f32 %v311, 0.0
        %v568 = vmax.f32 %v312, 0.0
        %v569 = vmax.f32 %v313, 0.0
        %v570 = vmax.f32 %v314, 0.0
        %v571 = vmax.f32 %v315, 0.0
        %v572 = vmax.f32 %v316, 0.0
        %v573 = vmax.f32 %v317, 0.0
        %v574 = vmax.f32 %v318, 0.0
        %v575 = vmax.f32 %v319, 0.0
        %v576 = vmax.f32 %v320, 0.0
        %v577 = vmax.f32 %v321, 0.0
        %v578 = vmax.f32 %v322, 0.0
        %v579 = vmax.f32 %v323, 0.0
        %v580 = vmax.f32 %v324, 0.0
        %v581 = vmax.f32 %v325, 0.0
        %v582 = vmax.f32 %v326, 0.0
        %v583 = vmax.f32 %v327, 0.0
        %v584 = vmax.f32 %v328, 0.0
        %v585 = vmax.f32 %v329, 0.0
        %v586 = vmax.f32 %v330, 0.0
        %v587 = vmax.f32 %v331, 0.0
        %v588 = vmax.f32 %v332, 0.0
        %v589 = vmax.f32 %v333, 0.0
        %v590 = vmax.f32 %v334, 0.0
        %v591 = vmax.f32 %v335, 0.0
        %v592 = vmax.f32 %v336, 0.0
        %v593 = vmax.f32 %v337, 0.0
        %v594 = vmax.f32 %v338, 0.0
        %v595 = vmax.f32 %v339, 0.0
        %v596 = vmax.f32 %v340, 0.0
        %v597 = vmax.f32 %v341, 0.0
        %v598 = vmax.f32 %v342, 0.0
        %v599 = vmax.f32 %v343, 0.0
        %v600 = vmax.f32 %v344, 0.0
        %v601 = vmax.f32 %v345, 0.0
        %v602 = vmax.f32 %v346, 0.0
        %v603 = vmax.f32 %v347, 0.0
        %v604 = vmax.f32 %v348, 0.0
        %v605 = vmax.f32 %v349, 0.0
        %v606 = vmax.f32 %v350, 0.0
        %v607 = vmax.f32 %v351, 0.0
        %v608 = vmax.f32 %v352, 0.0
        %v609 = vmax.f32 %v353, 0.0
        %v610 = vmax.f32 %v354, 0.0
        %v611 = vmax.f32 %v355, 0.0
        %v612 = vmax.f32 %v356, 0.0
        %v613 = vmax.f32 %v357, 0.0
        %v614 = vmax.f32 %v358, 0.0
        %v615 = vmax.f32 %v359, 0.0
        %v616 = vmax.f32 %v360, 0.0
        %v617 = vmax.f32 %v361, 0.0
        %v618 = vmax.f32 %v362, 0.0
        %v619 = vmax.f32 %v363, 0.0
        %v620 = vmax.f32 %v364, 0.0
        %v621 = vmax.f32 %v365, 0.0
        %v622 = vmax.f32 %v366, 0.0
        %v623 = vmax.f32 %v367, 0.0
        %v624 = vmax.f32 %v368, 0.0
        %v625 = vmax.f32 %v369, 0.0
        %v626 = vmax.f32 %v370, 0.0
        %v627 = vmax.f32 %v371, 0.0
        %v628 = vmax.f32 %v372, 0.0
        %v629 = vmax.f32 %v373, 0.0
        %v630 = vmax.f32 %v374, 0.0
        %v631 = vmax.f32 %v375, 0.0
        %v632 = vmax.f32 %v376, 0.0
        %v633 = vmax.f32 %v377, 0.0
        %v634 = vmax.f32 %v378, 0.0
        %v635 = vmax.f32 %v379, 0.0
        %v636 = vmax.f32 %v380, 0.0
        %v637 = vmax.f32 %v381, 0.0
        %v638 = vmax.f32 %v382, 0.0
        %v639 = vmax.f32 %v383, 0.0
        %v640 = vmax.f32 %v384, 0.0
        %v641 = vmax.f32 %v385, 0.0
        %v642 = vmax.f32 %v386, 0.0
        %v643 = vmax.f32 %v387, 0.0
        %v644 = vmax.f32 %v388, 0.0
        %v645 = vmax.f32 %v389, 0.0
        %v646 = vmax.f32 %v390, 0.0
        %v647 = vmax.f32 %v391, 0.0
        %v648 = vmax.f32 %v392, 0.0
        %v649 = vmax.f32 %v393, 0.0
        %v650 = vmax.f32 %v394, 0.0
        %v651 = vmax.f32 %v395, 0.0
        %v652 = vmul.f32 %v396, %v396
        %v653 = vmul.f32 %v397, %v397
        %v654 = vmul.f32 %v398, %v398
        %v655 = vmul.f32 %v399, %v399
        %v656 = vmul.f32 %v400, %v400
        %v657 = vmul.f32 %v401, %v401
        %v658 = vmul.f32 %v402, %v402
        %v659 = vmul.f32 %v403, %v403
        %v660 = vmul.f32 %v404, %v404
        %v661 = vmul.f32 %v405, %v405
        %v662 = vmul.f32 %v406, %v406
        %v663 = vmul.f32 %v407, %v407
        %v664 = vmul.f32 %v408, %v408
        %v665 = vmul.f32 %v409, %v409
        %v666 = vmul.f32 %v410, %v410
        %v667 = vmul.f32 %v411, %v411
        %v668 = vmul.f32 %v412, %v412
        %v669 = vmul.f32 %v413, %v413
        %v670 = vmul.f32 %v414, %v414
        %v671 = vmul.f32 %v415, %v415
        %v672 = vmul.f32 %v416, %v416
        %v673 = vmul.f32 %v417, %v417
        %v674 = vmul.f32 %v418, %v418
        %v675 = vmul.f32 %v419, %v419
        %v676 = vmul.f32 %v420, %v420
        %v677 = vmul.f32 %v421, %v421
        %v678 = vmul.f32 %v422, %v422
        %v679 = vmul.f32 %v423, %v423
        %v680 = vmul.f32 %v424, %v424
        %v681 = vmul.f32 %v425, %v425
        %v682 = vmul.f32 %v426, %v426
        %v683 = vmul.f32 %v427, %v427
        %v684 = vmul.f32 %v428, %v428
        %v685 = vmul.f32 %v429, %v429
        %v686 = vmul.f32 %v430, %v430
        %v687 = vmul.f32 %v431, %v431
        %v688 = vmul.f32 %v432, %v432
        %v689 = vmul.f32 %v433, %v433
        %v690 = vmul.f32 %v434, %v434
        %v691 = vmul.f32 %v435, %v435
        %v692 = vmul.f32 %v436, %v436
        %v693 = vmul.f32 %v437, %v437
        %v694 = vmul.f32 %v438, %v438
        %v695 = vmul.f32 %v439, %v439
        %v696 = vmul.f32 %v440, %v440
        %v697 = vmul.f32 %v441, %v441
        %v698 = vmul.f32 %v442, %v442
        %v699 = vmul.f32 %v443, %v443
        %v700 = vmul.f32 %v444, %v444
        %v701 = vmul.f32 %v445, %v445
        %v702 = vmul.f32 %v446, %v446
        %v703 = vmul.f32 %v447, %v447
        %v704 = vmul.f32 %v448, %v448
        %v705 = vmul.f32 %v449, %v449
        %v706 = vmul.f32 %v450, %v450
        %v707 = vmul.f32 %v451, %v451
        %v708 = vmul.f32 %v452, %v452
        %v709 = vmul.f32 %v453, %v453
        %v710 = vmul.f32 %v454, %v454
        %v711 = vmul.f32 %v455, %v455
        %v712 = vmul.f32 %v456, %v456
        %v713 = vmul.f32 %v457, %v457
        %v714 = vmul.f32 %v458, %v458
        %v715 = vmul.f32 %v459, %v459
        %v716 = vmul.f32 %v460, %v460
        %v717 = vmul.f32 %v461, %v461
        %v718 = vmul.f32 %v462, %v462
        %v719 = vmul.f32 %v463, %v463
        %v720 = vmul.f32 %v464, %v464
        %v721 = vmul.f32 %v465, %v465
        %v722 = vmul.f32 %v466, %v466
        %v723 = vmul.f32 %v467, %v467
        %v724 = vmul.f32 %v468, %v468
        %v725 = vmul.f32 %v469, %v469
        %v726 = vmul.f32 %v470, %v470
        %v727 = vmul.f32 %v471, %v471
        %v728 = vmul.f32 %v472, %v472
        %v729 = vmul.f32 %v473, %v473
        %v730 = vmul.f32 %v474, %v474
        %v731 = vmul.f32 %v475, %v475
        %v732 = vmul.f32 %v476, %v476
        %v733 = vmul.f32 %v477, %v477
        %v734 = vmul.f32 %v478, %v478
        %v735 = vmul.f32 %v479, %v479
        %v736 = vmul.f32 %v480, %v480
        %v737 = vmul.f32 %v481, %v481
        %v738 = vmul.f32 %v482, %v482
        %v739 = vmul.f32 %v483, %v483
        %v740 = vmul.f32 %v484, %v484
        %v741 = vmul.f32 %v485, %v485
        %v742 = vmul.f32 %v486, %v486
        %v743 = vmul.f32 %v487, %v487
        %v744 = vmul.f32 %v488, %v488
        %v745 = vmul.f32 %v489, %v489
        %v746 = vmul.f32 %v490, %v490
        %v747 = vmul.f32 %v491, %v491
        %v748 = vmul.f32 %v492, %v492
        %v749 = vmul.f32 %v493, %v493
        %v750 = vmul.f32 %v494, %v494
        %v751 = vmul.f32 %v495, %v495
        %v752 = vmul.f32 %v496, %v496
        %v753 = vmul.f32 %v497, %v497
        %v754 = vmul.f32 %v498, %v498
        %v755 = vmul.f32 %v499, %v499
        %v756 = vmul.f32 %v500, %v500
        %v757 = vmul.f32 %v501, %v501
        %v758 = vmul.f32 %v502, %v502
        %v759 = vmul.f32 %v503, %v503
        %v760 = vmul.f32 %v504, %v504
        %v761 = vmul.f32 %v505, %v505
        %v762 = vmul.f32 %v506, %v506
        %v763 = vmul.f32 %v507, %v507
        %v764 = vmul.f32 %v508, %v508
        %v765 = vmul.f32 %v509, %v509
        %v766 = vmul.f32 %v510, %v510
        %v767 = vmul.f32 %v511, %v511
        %v768 = vmul.f32 %v512, %v512
        %v769 = vmul.f32 %v513, %v513
        %v770 = vmul.f32 %v514, %v514
        %v771 = vmul.f32 %v515, %v515
        %v772 = vmul.f32 %v516, %v516
        %v773 = vmul.f32 %v517, %v517
        %v774 = vmul.f32 %v518, %v518
        %v775 = vmul.f32 %v519, %v519
        %v776 = vmul.f32 %v520, %v520
        %v777 = vmul.f32 %v521, %v521
        %v778 = vmul.f32 %v522, %v522
        %v779 = vmul.f32 %v523, %v523
        %v780 = vmul.f32 %v524, %v524
        %v781 = vmul.f32 %v525, %v525
        %v782 = vmul.f32 %v526, %v526
        %v783 = vmul.f32 %v527, %v527
        %v784 = vmul.f32 %v528, %v528
        %v785 = vmul.f32 %v529, %v529
        %v786 = vmul.f32 %v530, %v530
        %v787 = vmul.f32 %v531, %v531
        %v788 = vmul.f32 %v532, %v532
        %v789 = vmul.f32 %v533, %v533
        %v790 = vmul.f32 %v534, %v534
        %v791 = vmul.f32 %v535, %v535
        %v792 = vmul.f32 %v536, %v536
        %v793 = vmul.f32 %v537, %v537
        %v794 = vmul.f32 %v538, %v538
        %v795 = vmul.f32 %v539, %v539
        %v796 = vmul.f32 %v540, %v540
        %v797 = vmul.f32 %v541, %v541
        %v798 = vmul.f32 %v542, %v542
        %v799 = vmul.f32 %v543, %v543
        %v800 = vmul.f32 %v544, %v544
        %v801 = vmul.f32 %v545, %v545
        %v802 = vmul.f32 %v546, %v546
        %v803 = vmul.f32 %v547, %v547
        %v804 = vmul.f32 %v548, %v548
        %v805 = vmul.f32 %v549, %v549
        %v806 = vmul.f32 %v550, %v550
        %v807 = vmul.f32 %v551, %v551
        %v808 = vmul.f32 %v552, %v552
        %v809 = vmul.f32 %v553, %v553
        %v810 = vmul.f32 %v554, %v554
        %v811 = vmul.f32 %v555, %v555
        %v812 = vmul.f32 %v556, %v556
        %v813 = vmul.f32 %v557, %v557
        %v814 = vmul.f32 %v558, %v558
        %v815 = vmul.f32 %v559, %v559
        %v816 = vmul.f32 %v560, %v560
        %v817 = vmul.f32 %v561, %v561
        %v818 = vmul.f32 %v562, %v562
        %v819 = vmul.f32 %v563, %v563
        %v820 = vmul.f32 %v564, %v564
        %v821 = vmul.f32 %v565, %v565
        %v822 = vmul.f32 %v566, %v566
        %v823 = vmul.f32 %v567, %v567
        %v824 = vmul.f32 %v568, %v568
        %v825 = vmul.f32 %v569, %v569
        %v826 = vmul.f32 %v570, %v570
        %v827 = vmul.f32 %v571, %v571
        %v828 = vmul.f32 %v572, %v572
        %v829 = vmul.f32 %v573, %v573
        %v830 = vmul.f32 %v574, %v574
        %v831 = vmul.f32 %v575, %v575
        %v832 = vmul.f32 %v576, %v576
        %v833 = vmul.f32 %v577, %v577
        %v834 = vmul.f32 %v578, %v578
        %v835 = vmul.f32 %v579, %v579
        %v836 = vmul.f32 %v580, %v580
        %v837 = vmul.f32 %v581, %v581
        %v838 = vmul.f32 %v582, %v582
        %v839 = vmul.f32 %v583, %v583
        %v840 = vmul.f32 %v584, %v584
        %v841 = vmul.f32 %v585, %v585
        %v842 = vmul.f32 %v586, %v586
        %v843 = vmul.f32 %v587, %v587
        %v844 = vmul.f32 %v588, %v588
        %v845 = vmul.f32 %v589, %v589
        %v846 = vmul.f32 %v590, %v590
        %v847 = vmul.f32 %v591, %v591
        %v848 = vmul.f32 %v592, %v592
        %v849 = vmul.f32 %v593, %v593
        %v850 = vmul.f32 %v594, %v594
        %v851 = vmul.f32 %v595, %v595
        %v852 = vmul.f32 %v596, %v596
        %v853 = vmul.f32 %v597, %v597
        %v854 = vmul.f32 %v598, %v598
        %v855 = vmul.f32 %v599, %v599
        %v856 = vmul.f32 %v600, %v600
        %v857 = vmul.f32 %v601, %v601
        %v858 = vmul.f32 %v602, %v602
        %v859 = vmul.f32 %v603, %v603
        %v860 = vmul.f32 %v604, %v604
        %v861 = vmul.f32 %v605, %v605
        %v862 = vmul.f32 %v606, %v606
        %v863 = vmul.f32 %v607, %v607
        %v864 = vmul.f32 %v608, %v608
        %v865 = vmul.f32 %v609, %v609
        %v866 = vmul.f32 %v610, %v610
        %v867 = vmul.f32 %v611, %v611
        %v868 = vmul.f32 %v612, %v612
        %v869 = vmul.f32 %v613, %v613
        %v870 = vmul.f32 %v614, %v614
        %v871 = vmul.f32 %v615, %v615
        %v872 = vmul.f32 %v616, %v616
        %v873 = vmul.f32 %v617, %v617
        %v874 = vmul.f32 %v618, %v618
        %v875 = vmul.f32 %v619, %v619
        %v876 = vmul.f32 %v620, %v620
        %v877 = vmul.f32 %v621, %v621
        %v878 = vmul.f32 %v622, %v622
        %v879 = vmul.f32 %v623, %v623
        %v880 = vmul.f32 %v624, %v624
        %v881 = vmul.f32 %v625, %v625
        %v882 = vmul.f32 %v626, %v626
        %v883 = vmul.f32 %v627, %v627
        %v884 = vmul.f32 %v628, %v628
        %v885 = vmul.f32 %v629, %v629
        %v886 = vmul.f32 %v630, %v630
        %v887 = vmul.f32 %v631, %v631
        %v888 = vmul.f32 %v632, %v632
        %v889 = vmul.f32 %v633, %v633
        %v890 = vmul.f32 %v634, %v634
        %v891 = vmul.f32 %v635, %v635
        %v892 = vmul.f32 %v636, %v636
        %v893 = vmul.f32 %v637, %v637
        %v894 = vmul.f32 %v638, %v638
        %v895 = vmul.f32 %v639, %v639
        %v896 = vmul.f32 %v640, %v640
        %v897 = vmul.f32 %v641, %v641
        %v898 = vmul.f32 %v642, %v642
        %v899 = vmul.f32 %v643, %v643
        %v900 = vmul.f32 %v644, %v644
        %v901 = vmul.f32 %v645, %v645
        %v902 = vmul.f32 %v646, %v646
        %v903 = vmul.f32 %v647, %v647
        %v904 = vmul.f32 %v648, %v648
        %v905 = vmul.f32 %v649, %v649
        %v906 = vmul.f32 %v650, %v650
        %v907 = vmul.f32 %v651, %v651
        %v908 = vmul.f32 %v652, %v396
        %v909 = vmul.f32 %v653, %v397
        %v910 = vmul.f32 %v654, %v398
        %v911 = vmul.f32 %v655, %v399
        %v912 = vmul.f32 %v656, %v400
        %v913 = vmul.f32 %v657, %v401
        %v914 = vmul.f32 %v658, %v402
        %v915 = vmul.f32 %v659, %v403
        %v916 = vmul.f32 %v660, %v404
        %v917 = vmul.f32 %v661, %v405
        %v918 = vmul.f32 %v662, %v406
        %v919 = vmul.f32 %v663, %v407
        %v920 = vmul.f32 %v664, %v408
        %v921 = vmul.f32 %v665, %v409
        %v922 = vmul.f32 %v666, %v410
        %v923 = vmul.f32 %v667, %v411
        %v924 = vmul.f32 %v668, %v412
        %v925 = vmul.f32 %v669, %v413
        %v926 = vmul.f32 %v670, %v414
        %v927 = vmul.f32 %v671, %v415
        %v928 = vmul.f32 %v672, %v416
        %v929 = vmul.f32 %v673, %v417
        %v930 = vmul.f32 %v674, %v418
        %v931 = vmul.f32 %v675, %v419
        %v932 = vmul.f32 %v676, %v420
        %v933 = vmul.f32 %v677, %v421
        %v934 = vmul.f32 %v678, %v422
        %v935 = vmul.f32 %v679, %v423
        %v936 = vmul.f32 %v680, %v424
        %v937 = vmul.f32 %v681, %v425
        %v938 = vmul.f32 %v682, %v426
        %v939 = vmul.f32 %v683, %v427
        %v940 = vmul.f32 %v684, %v428
        %v941 = vmul.f32 %v685, %v429
        %v942 = vmul.f32 %v686, %v430
        %v943 = vmul.f32 %v687, %v431
        %v944 = vmul.f32 %v688, %v432
        %v945 = vmul.f32 %v689, %v433
        %v946 = vmul.f32 %v690, %v434
        %v947 = vmul.f32 %v691, %v435
        %v948 = vmul.f32 %v692, %v436
        %v949 = vmul.f32 %v693, %v437
        %v950 = vmul.f32 %v694, %v438
        %v951 = vmul.f32 %v695, %v439
        %v952 = vmul.f32 %v696, %v440
        %v953 = vmul.f32 %v697, %v441
        %v954 = vmul.f32 %v698, %v442
        %v955 = vmul.f32 %v699, %v443
        %v956 = vmul.f32 %v700, %v444
        %v957 = vmul.f32 %v701, %v445
        %v958 = vmul.f32 %v702, %v446
        %v959 = vmul.f32 %v703, %v447
        %v960 = vmul.f32 %v704, %v448
        %v961 = vmul.f32 %v705, %v449
        %v962 = vmul.f32 %v706, %v450
        %v963 = vmul.f32 %v707, %v451
        %v964 = vmul.f32 %v708, %v452
        %v965 = vmul.f32 %v709, %v453
        %v966 = vmul.f32 %v710, %v454
        %v967 = vmul.f32 %v711, %v455
        %v968 = vmul.f32 %v712, %v456
        %v969 = vmul.f32 %v713, %v457
        %v970 = vmul.f32 %v714, %v458
        %v971 = vmul.f32 %v715, %v459
        %v972 = vmul.f32 %v716, %v460
        %v973 = vmul.f32 %v717, %v461
        %v974 = vmul.f32 %v718, %v462
        %v975 = vmul.f32 %v719, %v463
        %v976 = vmul.f32 %v720, %v464
        %v977 = vmul.f32 %v721, %v465
        %v978 = vmul.f32 %v722, %v466
        %v979 = vmul.f32 %v723, %v467
        %v980 = vmul.f32 %v724, %v468
        %v981 = vmul.f32 %v725, %v469
        %v982 = vmul.f32 %v726, %v470
        %v983 = vmul.f32 %v727, %v471
        %v984 = vmul.f32 %v728, %v472
        %v985 = vmul.f32 %v729, %v473
        %v986 = vmul.f32 %v730, %v474
        %v987 = vmul.f32 %v731, %v475
        %v988 = vmul.f32 %v732, %v476
        %v989 = vmul.f32 %v733, %v477
        %v990 = vmul.f32 %v734, %v478
        %v991 = vmul.f32 %v735, %v479
        %v992 = vmul.f32 %v736, %v480
        %v993 = vmul.f32 %v737, %v481
        %v994 = vmul.f32 %v738, %v482
        %v995 = vmul.f32 %v739, %v483
        %v996 = vmul.f32 %v740, %v484
        %v997 = vmul.f32 %v741, %v485
        %v998 = vmul.f32 %v742, %v486
        %v999 = vmul.f32 %v743, %v487
        %v1000 = vmul.f32 %v744, %v488
        %v1001 = vmul.f32 %v745, %v489
        %v1002 = vmul.f32 %v746, %v490
        %v1003 = vmul.f32 %v747, %v491
        %v1004 = vmul.f32 %v748, %v492
        %v1005 = vmul.f32 %v749, %v493
        %v1006 = vmul.f32 %v750, %v494
        %v1007 = vmul.f32 %v751, %v495
        %v1008 = vmul.f32 %v752, %v496
        %v1009 = vmul.f32 %v753, %v497
        %v1010 = vmul.f32 %v754, %v498
        %v1011 = vmul.f32 %v755, %v499
        %v1012 = vmul.f32 %v756, %v500
        %v1013 = vmul.f32 %v757, %v501
        %v1014 = vmul.f32 %v758, %v502
        %v1015 = vmul.f32 %v759, %v503
        %v1016 = vmul.f32 %v760, %v504
        %v1017 = vmul.f32 %v761, %v505
        %v1018 = vmul.f32 %v762, %v506
        %v1019 = vmul.f32 %v763, %v507
        %v1020 = vmul.f32 %v764, %v508
        %v1021 = vmul.f32 %v765, %v509
        %v1022 = vmul.f32 %v766, %v510
        %v1023 = vmul.f32 %v767, %v511
        %v1024 = vmul.f32 %v768, %v512
        %v1025 = vmul.f32 %v769, %v513
        %v1026 = vmul.f32 %v770, %v514
        %v1027 = vmul.f32 %v771, %v515
        %v1028 = vmul.f32 %v772, %v516
        %v1029 = vmul.f32 %v773, %v517
        %v1030 = vmul.f32 %v774, %v518
        %v1031 = vmul.f32 %v775, %v519
        %v1032 = vmul.f32 %v776, %v520
        %v1033 = vmul.f32 %v777, %v521
        %v1034 = vmul.f32 %v778, %v522
        %v1035 = vmul.f32 %v779, %v523
        %v1036 = vmul.f32 %v780, %v524
        %v1037 = vmul.f32 %v781, %v525
        %v1038 = vmul.f32 %v782, %v526
        %v1039 = vmul.f32 %v783, %v527
        %v1040 = vmul.f32 %v784, %v528
        %v1041 = vmul.f32 %v785, %v529
        %v1042 = vmul.f32 %v786, %v530
        %v1043 = vmul.f32 %v787, %v531
        %v1044 = vmul.f32 %v788, %v532
        %v1045 = vmul.f32 %v789, %v533
        %v1046 = vmul.f32 %v790, %v534
        %v1047 = vmul.f32 %v791, %v535
        %v1048 = vmul.f32 %v792, %v536
        %v1049 = vmul.f32 %v793, %v537
        %v1050 = vmul.f32 %v794, %v538
        %v1051 = vmul.f32 %v795, %v539
        %v1052 = vmul.f32 %v796, %v540
        %v1053 = vmul.f32 %v797, %v541
        %v1054 = vmul.f32 %v798, %v542
        %v1055 = vmul.f32 %v799, %v543
        %v1056 = vmul.f32 %v800, %v544
        %v1057 = vmul.f32 %v801, %v545
        %v1058 = vmul.f32 %v802, %v546
        %v1059 = vmul.f32 %v803, %v547
        %v1060 = vmul.f32 %v804, %v548
        %v1061 = vmul.f32 %v805, %v549
        %v1062 = vmul.f32 %v806, %v550
        %v1063 = vmul.f32 %v807, %v551
        %v1064 = vmul.f32 %v808, %v552
        %v1065 = vmul.f32 %v809, %v553
        %v1066 = vmul.f32 %v810, %v554
        %v1067 = vmul.f32 %v811, %v555
        %v1068 = vmul.f32 %v812, %v556
        %v1069 = vmul.f32 %v813, %v557
        %v1070 = vmul.f32 %v814, %v558
        %v1071 = vmul.f32 %v815, %v559
        %v1072 = vmul.f32 %v816, %v560
        %v1073 = vmul.f32 %v817, %v561
        %v1074 = vmul.f32 %v818, %v562
        %v1075 = vmul.f32 %v819, %v563
        %v1076 = vmul.f32 %v820, %v564
        %v1077 = vmul.f32 %v821, %v565
        %v1078 = vmul.f32 %v822, %v566
        %v1079 = vmul.f32 %v823, %v567
        %v1080 = vmul.f32 %v824, %v568
        %v1081 = vmul.f32 %v825, %v569
        %v1082 = vmul.f32 %v826, %v570
        %v1083 = vmul.f32 %v827, %v571
        %v1084 = vmul.f32 %v828, %v572
        %v1085 = vmul.f32 %v829, %v573
        %v1086 = vmul.f32 %v830, %v574
        %v1087 = vmul.f32 %v831, %v575
        %v1088 = vmul.f32 %v832, %v576
        %v1089 = vmul.f32 %v833, %v577
        %v1090 = vmul.f32 %v834, %v578
        %v1091 = vmul.f32 %v835, %v579
        %v1092 = vmul.f32 %v836, %v580
        %v1093 = vmul.f32 %v837, %v581
        %v1094 = vmul.f32 %v838, %v582
        %v1095 = vmul.f32 %v839, %v583
        %v1096 = vmul.f32 %v840, %v584
        %v1097 = vmul.f32 %v841, %v585
        %v1098 = vmul.f32 %v842, %v586
        %v1099 = vmul.f32 %v843, %v587
        %v1100 = vmul.f32 %v844, %v588
        %v1101 = vmul.f32 %v845, %v589
        %v1102 = vmul.f32 %v846, %v590
        %v1103 = vmul.f32 %v847, %v591
        %v1104 = vmul.f32 %v848, %v592
        %v1105 = vmul.f32 %v849, %v593
        %v1106 = vmul.f32 %v850, %v594
        %v1107 = vmul.f32 %v851, %v595
        %v1108 = vmul.f32 %v852, %v596
        %v1109 = vmul.f32 %v853, %v597
        %v1110 = vmul.f32 %v854, %v598
        %v1111 = vmul.f32 %v855, %v599
        %v1112 = vmul.f32 %v856, %v600
        %v1113 = vmul.f32 %v857, %v601
        %v1114 = vmul.f32 %v858, %v602
        %v1115 = vmul.f32 %v859, %v603
        %v1116 = vmul.f32 %v860, %v604
        %v1117 = vmul.f32 %v861, %v605
        %v1118 = vmul.f32 %v862, %v606
        %v1119 = vmul.f32 %v863, %v607
        %v1120 = vmul.f32 %v864, %v608
        %v1121 = vmul.f32 %v865, %v609
        %v1122 = vmul.f32 %v866, %v610
        %v1123 = vmul.f32 %v867, %v611
        %v1124 = vmul.f32 %v868, %v612
        %v1125 = vmul.f32 %v869, %v613
        %v1126 = vmul.f32 %v870, %v614
        %v1127 = vmul.f32 %v871, %v615
        %v1128 = vmul.f32 %v872, %v616
        %v1129 = vmul.f32 %v873, %v617
        %v1130 = vmul.f32 %v874, %v618
        %v1131 = vmul.f32 %v875, %v619
        %v1132 = vmul.f32 %v876, %v620
        %v1133 = vmul.f32 %v877, %v621
        %v1134 = vmul.f32 %v878, %v622
        %v1135 = vmul.f32 %v879, %v623
        %v1136 = vmul.f32 %v880, %v624
        %v1137 = vmul.f32 %v881, %v625
        %v1138 = vmul.f32 %v882, %v626
        %v1139 = vmul.f32 %v883, %v627
        %v1140 = vmul.f32 %v884, %v628
        %v1141 = vmul.f32 %v885, %v629
        %v1142 = vmul.f32 %v886, %v630
        %v1143 = vmul.f32 %v887, %v631
        %v1144 = vmul.f32 %v888, %v632
        %v1145 = vmul.f32 %v889, %v633
        %v1146 = vmul.f32 %v890, %v634
        %v1147 = vmul.f32 %v891, %v635
        %v1148 = vmul.f32 %v892, %v636
        %v1149 = vmul.f32 %v893, %v637
        %v1150 = vmul.f32 %v894, %v638
        %v1151 = vmul.f32 %v895, %v639
        %v1152 = vmul.f32 %v896, %v640
        %v1153 = vmul.f32 %v897, %v641
        %v1154 = vmul.f32 %v898, %v642
        %v1155 = vmul.f32 %v899, %v643
        %v1156 = vmul.f32 %v900, %v644
        %v1157 = vmul.f32 %v901, %v645
        %v1158 = vmul.f32 %v902, %v646
        %v1159 = vmul.f32 %v903, %v647
        %v1160 = vmul.f32 %v904, %v648
        %v1161 = vmul.f32 %v905, %v649
        %v1162 = vmul.f32 %v906, %v650
        %v1163 = vmul.f32 %v907, %v651
        %v1164 = vmul.f32 %v908, 0.16666667
        %v1165 = vmul.f32 %v909, 0.16666667
        %v1166 = vmul.f32 %v910, 0.16666667
        %v1167 = vmul.f32 %v911, 0.16666667
        %v1168 = vmul.f32 %v912, 0.16666667
        %v1169 = vmul.f32 %v913, 0.16666667
        %v1170 = vmul.f32 %v914, 0.16666667
        %v1171 = vmul.f32 %v915, 0.16666667
        %v1172 = vmul.f32 %v916, 0.16666667
        %v1173 = vmul.f32 %v917, 0.16666667
        %v1174 = vmul.f32 %v918, 0.16666667
        %v1175 = vmul.f32 %v919, 0.16666667
        %v1176 = vmul.f32 %v920, 0.16666667
        %v1177 = vmul.f32 %v921, 0.16666667
        %v1178 = vmul.f32 %v922, 0.16666667
        %v1179 = vmul.f32 %v923, 0.16666667
        %v1180 = vmul.f32 %v924, 0.16666667
        %v1181 = vmul.f32 %v925, 0.16666667
        %v1182 = vmul.f32 %v926, 0.16666667
        %v1183 = vmul.f32 %v927, 0.16666667
        %v1184 = vmul.f32 %v928, 0.16666667
        %v1185 = vmul.f32 %v929, 0.16666667
        %v1186 = vmul.f32 %v930, 0.16666667
        %v1187 = vmul.f32 %v931, 0.16666667
        %v1188 = vmul.f32 %v932, 0.16666667
        %v1189 = vmul.f32 %v933, 0.16666667
        %v1190 = vmul.f32 %v934, 0.16666667
        %v1191 = vmul.f32 %v935, 0.16666667
        %v1192 = vmul.f32 %v936, 0.16666667
        %v1193 = vmul.f32 %v937, 0.16666667
        %v1194 = vmul.f32 %v938, 0.16666667
        %v1195 = vmul.f32 %v939, 0.16666667
        %v1196 = vmul.f32 %v940, 0.16666667
        %v1197 = vmul.f32 %v941, 0.16666667
        %v1198 = vmul.f32 %v942, 0.16666667
        %v1199 = vmul.f32 %v943, 0.16666667
        %v1200 = vmul.f32 %v944, 0.16666667
        %v1201 = vmul.f32 %v945, 0.16666667
        %v1202 = vmul.f32 %v946, 0.16666667
        %v1203 = vmul.f32 %v947, 0.16666667
        %v1204 = vmul.f32 %v948, 0.16666667
        %v1205 = vmul.f32 %v949, 0.16666667
        %v1206 = vmul.f32 %v950, 0.16666667
        %v1207 = vmul.f32 %v951, 0.16666667
        %v1208 = vmul.f32 %v952, 0.16666667
        %v1209 = vmul.f32 %v953, 0.16666667
        %v1210 = vmul.f32 %v954, 0.16666667
        %v1211 = vmul.f32 %v955, 0.16666667
        %v1212 = vmul.f32 %v956, 0.16666667
        %v1213 = vmul.f32 %v957, 0.16666667
        %v1214 = vmul.f32 %v958, 0.16666667
        %v1215 = vmul.f32 %v959, 0.16666667
        %v1216 = vmul.f32 %v960, 0.16666667
        %v1217 = vmul.f32 %v961, 0.16666667
        %v1218 = vmul.f32 %v962, 0.16666667
        %v1219 = vmul.f32 %v963, 0.16666667
        %v1220 = vmul.f32 %v964, 0.16666667
        %v1221 = vmul.f32 %v965, 0.16666667
        %v1222 = vmul.f32 %v966, 0.16666667
        %v1223 = vmul.f32 %v967, 0.16666667
        %v1224 = vmul.f32 %v968, 0.16666667
        %v1225 = vmul.f32 %v969, 0.16666667
        %v1226 = vmul.f32 %v970, 0.16666667
        %v1227 = vmul.f32 %v971, 0.16666667
        %v1228 = vmul.f32 %v972, 0.16666667
        %v1229 = vmul.f32 %v973, 0.16666667
        %v1230 = vmul.f32 %v974, 0.16666667
        %v1231 = vmul.f32 %v975, 0.16666667
        %v1232 = vmul.f32 %v976, 0.16666667
        %v1233 = vmul.f32 %v977, 0.16666667
        %v1234 = vmul.f32 %v978, 0.16666667
        %v1235 = vmul.f32 %v979, 0.16666667
        %v1236 = vmul.f32 %v980, 0.16666667
        %v1237 = vmul.f32 %v981, 0.16666667
        %v1238 = vmul.f32 %v982, 0.16666667
        %v1239 = vmul.f32 %v983, 0.16666667
        %v1240 = vmul.f32 %v984, 0.16666667
        %v1241 = vmul.f32 %v985, 0.16666667
        %v1242 = vmul.f32 %v986, 0.16666667
        %v1243 = vmul.f32 %v987, 0.16666667
        %v1244 = vmul.f32 %v988, 0.16666667
        %v1245 = vmul.f32 %v989, 0.16666667
        %v1246 = vmul.f32 %v990, 0.16666667
        %v1247 = vmul.f32 %v991, 0.16666667
        %v1248 = vmul.f32 %v992, 0.16666667
        %v1249 = vmul.f32 %v993, 0.16666667
        %v1250 = vmul.f32 %v994, 0.16666667
        %v1251 = vmul.f32 %v995, 0.16666667
        %v1252 = vmul.f32 %v996, 0.16666667
        %v1253 = vmul.f32 %v997, 0.16666667
        %v1254 = vmul.f32 %v998, 0.16666667
        %v1255 = vmul.f32 %v999, 0.16666667
        %v1256 = vmul.f32 %v1000, 0.16666667
        %v1257 = vmul.f32 %v1001, 0.16666667
        %v1258 = vmul.f32 %v1002, 0.16666667
        %v1259 = vmul.f32 %v1003, 0.16666667
        %v1260 = vmul.f32 %v1004, 0.16666667
        %v1261 = vmul.f32 %v1005, 0.16666667
        %v1262 = vmul.f32 %v1006, 0.16666667
        %v1263 = vmul.f32 %v1007, 0.16666667
        %v1264 = vmul.f32 %v1008, 0.16666667
        %v1265 = vmul.f32 %v1009, 0.16666667
        %v1266 = vmul.f32 %v1010, 0.16666667
        %v1267 = vmul.f32 %v1011, 0.16666667
        %v1268 = vmul.f32 %v1012, 0.16666667
        %v1269 = vmul.f32 %v1013, 0.16666667
        %v1270 = vmul.f32 %v1014, 0.16666667
        %v1271 = vmul.f32 %v1015, 0.16666667
        %v1272 = vmul.f32 %v1016, 0.16666667
        %v1273 = vmul.f32 %v1017, 0.16666667
        %v1274 = vmul.f32 %v1018, 0.16666667
        %v1275 = vmul.f32 %v1019, 0.16666667
        %v1276 = vmul.f32 %v1020, 0.16666667
        %v1277 = vmul.f32 %v1021, 0.16666667
        %v1278 = vmul.f32 %v1022, 0.16666667
        %v1279 = vmul.f32 %v1023, 0.16666667
        %v1280 = vmul.f32 %v1024, 0.16666667
        %v1281 = vmul.f32 %v1025, 0.16666667
        %v1282 = vmul.f32 %v1026, 0.16666667
        %v1283 = vmul.f32 %v1027, 0.16666667
        %v1284 = vmul.f32 %v1028, 0.16666667
        %v1285 = vmul.f32 %v1029, 0.16666667
        %v1286 = vmul.f32 %v1030, 0.16666667
        %v1287 = vmul.f32 %v1031, 0.16666667
        %v1288 = vmul.f32 %v1032, 0.16666667
        %v1289 = vmul.f32 %v1033, 0.16666667
        %v1290 = vmul.f32 %v1034, 0.16666667
        %v1291 = vmul.f32 %v1035, 0.16666667
        %v1292 = vmul.f32 %v1036, 0.16666667
        %v1293 = vmul.f32 %v1037, 0.16666667
        %v1294 = vmul.f32 %v1038, 0.16666667
        %v1295 = vmul.f32 %v1039, 0.16666667
        %v1296 = vmul.f32 %v1040, 0.16666667
        %v1297 = vmul.f32 %v1041, 0.16666667
        %v1298 = vmul.f32 %v1042, 0.16666667
        %v1299 = vmul.f32 %v1043, 0.16666667
        %v1300 = vmul.f32 %v1044, 0.16666667
        %v1301 = vmul.f32 %v1045, 0.16666667
        %v1302 = vmul.f32 %v1046, 0.16666667
        %v1303 = vmul.f32 %v1047, 0.16666667
        %v1304 = vmul.f32 %v1048, 0.16666667
        %v1305 = vmul.f32 %v1049, 0.16666667
        %v1306 = vmul.f32 %v1050, 0.16666667
        %v1307 = vmul.f32 %v1051, 0.16666667
        %v1308 = vmul.f32 %v1052, 0.16666667
        %v1309 = vmul.f32 %v1053, 0.16666667
        %v1310 = vmul.f32 %v1054, 0.16666667
        %v1311 = vmul.f32 %v1055, 0.16666667
        %v1312 = vmul.f32 %v1056, 0.16666667
        %v1313 = vmul.f32 %v1057, 0.16666667
        %v1314 = vmul.f32 %v1058, 0.16666667
        %v1315 = vmul.f32 %v1059, 0.16666667
        %v1316 = vmul.f32 %v1060, 0.16666667
        %v1317 = vmul.f32 %v1061, 0.16666667
        %v1318 = vmul.f32 %v1062, 0.16666667
        %v1319 = vmul.f32 %v1063, 0.16666667
        %v1320 = vmul.f32 %v1064, 0.16666667
        %v1321 = vmul.f32 %v1065, 0.16666667
        %v1322 = vmul.f32 %v1066, 0.16666667
        %v1323 = vmul.f32 %v1067, 0.16666667
        %v1324 = vmul.f32 %v1068, 0.16666667
        %v1325 = vmul.f32 %v1069, 0.16666667
        %v1326 = vmul.f32 %v1070, 0.16666667
        %v1327 = vmul.f32 %v1071, 0.16666667
        %v1328 = vmul.f32 %v1072, 0.16666667
        %v1329 = vmul.f32 %v1073, 0.16666667
        %v1330 = vmul.f32 %v1074, 0.16666667
        %v1331 = vmul.f32 %v1075, 0.16666667
        %v1332 = vmul.f32 %v1076, 0.16666667
        %v1333 = vmul.f32 %v1077, 0.16666667
        %v1334 = vmul.f32 %v1078, 0.16666667
        %v1335 = vmul.f32 %v1079, 0.16666667
        %v1336 = vmul.f32 %v1080, 0.16666667
        %v1337 = vmul.f32 %v1081, 0.16666667
        %v1338 = vmul.f32 %v1082, 0.16666667
        %v1339 = vmul.f32 %v1083, 0.16666667
        %v1340 = vmul.f32 %v1084, 0.16666667
        %v1341 = vmul.f32 %v1085, 0.16666667
        %v1342 = vmul.f32 %v1086, 0.16666667
        %v1343 = vmul.f32 %v1087, 0.16666667
        %v1344 = vmul.f32 %v1088, 0.16666667
        %v1345 = vmul.f32 %v1089, 0.16666667
        %v1346 = vmul.f32 %v1090, 0.16666667
        %v1347 = vmul.f32 %v1091, 0.16666667
        %v1348 = vmul.f32 %v1092, 0.16666667
        %v1349 = vmul.f32 %v1093, 0.16666667
        %v1350 = vmul.f32 %v1094, 0.16666667
        %v1351 = vmul.f32 %v1095, 0.16666667
        %v1352 = vmul.f32 %v1096, 0.16666667
        %v1353 = vmul.f32 %v1097, 0.16666667
        %v1354 = vmul.f32 %v1098, 0.16666667
        %v1355 = vmul.f32 %v1099, 0.16666667
        %v1356 = vmul.f32 %v1100, 0.16666667
        %v1357 = vmul.f32 %v1101, 0.16666667
        %v1358 = vmul.f32 %v1102, 0.16666667
        %v1359 = vmul.f32 %v1103, 0.16666667
        %v1360 = vmul.f32 %v1104, 0.16666667
        %v1361 = vmul.f32 %v1105, 0.16666667
        %v1362 = vmul.f32 %v1106, 0.16666667
        %v1363 = vmul.f32 %v1107, 0.16666667
        %v1364 = vmul.f32 %v1108, 0.16666667
        %v1365 = vmul.f32 %v1109, 0.16666667
        %v1366 = vmul.f32 %v1110, 0.16666667
        %v1367 = vmul.f32 %v1111, 0.16666667
        %v1368 = vmul.f32 %v1112, 0.16666667
        %v1369 = vmul.f32 %v1113, 0.16666667
        %v1370 = vmul.f32 %v1114, 0.16666667
        %v1371 = vmul.f32 %v1115, 0.16666667
        %v1372 = vmul.f32 %v1116, 0.16666667
        %v1373 = vmul.f32 %v1117, 0.16666667
        %v1374 = vmul.f32 %v1118, 0.16666667
        %v1375 = vmul.f32 %v1119, 0.16666667
        %v1376 = vmul.f32 %v1120, 0.16666667
        %v1377 = vmul.f32 %v1121, 0.16666667
        %v1378 = vmul.f32 %v1122, 0.16666667
        %v1379 = vmul.f32 %v1123, 0.16666667
        %v1380 = vmul.f32 %v1124, 0.16666667
        %v1381 = vmul.f32 %v1125, 0.16666667
        %v1382 = vmul.f32 %v1126, 0.16666667
        %v1383 = vmul.f32 %v1127, 0.16666667
        %v1384 = vmul.f32 %v1128, 0.16666667
        %v1385 = vmul.f32 %v1129, 0.16666667
        %v1386 = vmul.f32 %v1130, 0.16666667
        %v1387 = vmul.f32 %v1131, 0.16666667
        %v1388 = vmul.f32 %v1132, 0.16666667
        %v1389 = vmul.f32 %v1133, 0.16666667
        %v1390 = vmul.f32 %v1134, 0.16666667
        %v1391 = vmul.f32 %v1135, 0.16666667
        %v1392 = vmul.f32 %v1136, 0.16666667
        %v1393 = vmul.f32 %v1137, 0.16666667
        %v1394 = vmul.f32 %v1138, 0.16666667
        %v1395 = vmul.f32 %v1139, 0.16666667
        %v1396 = vmul.f32 %v1140, 0.16666667
        %v1397 = vmul.f32 %v1141, 0.16666667
        %v1398 = vmul.f32 %v1142, 0.16666667
        %v1399 = vmul.f32 %v1143, 0.16666667
        %v1400 = vmul.f32 %v1144, 0.16666667
        %v1401 = vmul.f32 %v1145, 0.16666667
        %v1402 = vmul.f32 %v1146, 0.16666667
        %v1403 = vmul.f32 %v1147, 0.16666667
        %v1404 = vmul.f32 %v1148, 0.16666667
        %v1405 = vmul.f32 %v1149, 0.16666667
        %v1406 = vmul.f32 %v1150, 0.16666667
        %v1407 = vmul.f32 %v1151, 0.16666667
        %v1408 = vmul.f32 %v1152, 0.16666667
        %v1409 = vmul.f32 %v1153, 0.16666667
        %v1410 = vmul.f32 %v1154, 0.16666667
        %v1411 = vmul.f32 %v1155, 0.16666667
        %v1412 = vmul.f32 %v1156, 0.16666667
        %v1413 = vmul.f32 %v1157, 0.16666667
        %v1414 = vmul.f32 %v1158, 0.16666667
        %v1415 = vmul.f32 %v1159, 0.16666667
        %v1416 = vmul.f32 %v1160, 0.16666667
        %v1417 = vmul.f32 %v1161, 0.16666667
        %v1418 = vmul.f32 %v1162, 0.16666667
        %v1419 = vmul.f32 %v1163, 0.16666667
        %1420 = vst [vmem:[%s137] sm:$0xff] %v1164
        %1421 = vst [vmem:[%s137 + $0x8] sm:$0xff] %v1165
        %1422 = vst [vmem:[%s137 + $0x10] sm:$0xff] %v1166
        %1423 = vst [vmem:[%s137 + $0x18] sm:$0xff] %v1167
        %1424 = vst [vmem:[%s137 + $0x20] sm:$0xff] %v1168
        %1425 = vst [vmem:[%s137 + $0x28] sm:$0xff] %v1169
        %1426 = vst [vmem:[%s137 + $0x30] sm:$0xff] %v1170
        %1427 = vst [vmem:[%s137 + $0x38] sm:$0xff] %v1171
        %1428 = vst [vmem:[%s137 + $0x40] sm:$0xff] %v1172
        %1429 = vst [vmem:[%s137 + $0x48] sm:$0xff] %v1173
        %1430 = vst [vmem:[%s137 + $0x50] sm:$0xff] %v1174
        %1431 = vst [vmem:[%s137 + $0x58] sm:$0xff] %v1175
        %1432 = vst [vmem:[%s137 + $0x60] sm:$0xff] %v1176
        %1433 = vst [vmem:[%s137 + $0x68] sm:$0xff] %v1177
        %1434 = vst [vmem:[%s137 + $0x70] sm:$0xff] %v1178
        %1435 = vst [vmem:[%s137 + $0x78] sm:$0xff] %v1179
        %1436 = vst [vmem:[%s137 + $0x80] sm:$0xff] %v1180
        %1437 = vst [vmem:[%s137 + $0x88] sm:$0xff] %v1181
        %1438 = vst [vmem:[%s137 + $0x90] sm:$0xff] %v1182
        %1439 = vst [vmem:[%s137 + $0x98] sm:$0xff] %v1183
        %1440 = vst [vmem:[%s137 + $0xa0] sm:$0xff] %v1184
        %1441 = vst [vmem:[%s137 + $0xa8] sm:$0xff] %v1185
        %1442 = vst [vmem:[%s137 + $0xb0] sm:$0xff] %v1186
        %1443 = vst [vmem:[%s137 + $0xb8] sm:$0xff] %v1187
        %1444 = vst [vmem:[%s137 + $0xc0] sm:$0xff] %v1188
        %1445 = vst [vmem:[%s137 + $0xc8] sm:$0xff] %v1189
        %1446 = vst [vmem:[%s137 + $0xd0] sm:$0xff] %v1190
        %1447 = vst [vmem:[%s137 + $0xd8] sm:$0xff] %v1191
        %1448 = vst [vmem:[%s137 + $0xe0] sm:$0xff] %v1192
        %1449 = vst [vmem:[%s137 + $0xe8] sm:$0xff] %v1193
        %1450 = vst [vmem:[%s137 + $0xf0] sm:$0xff] %v1194
        %1451 = vst [vmem:[%s137 + $0xf8] sm:$0xff] %v1195
        %1452 = vst [vmem:[%s137 + $0x100] sm:$0xff] %v1196
        %1453 = vst [vmem:[%s137 + $0x108] sm:$0xff] %v1197
        %1454 = vst [vmem:[%s137 + $0x110] sm:$0xff] %v1198
        %1455 = vst [vmem:[%s137 + $0x118] sm:$0xff] %v1199
        %1456 = vst [vmem:[%s137 + $0x120] sm:$0xff] %v1200
        %1457 = vst [vmem:[%s137 + $0x128] sm:$0xff] %v1201
        %1458 = vst [vmem:[%s137 + $0x130] sm:$0xff] %v1202
        %1459 = vst [vmem:[%s137 + $0x138] sm:$0xff] %v1203
        %1460 = vst [vmem:[%s137 + $0x140] sm:$0xff] %v1204
        %1461 = vst [vmem:[%s137 + $0x148] sm:$0xff] %v1205
        %1462 = vst [vmem:[%s137 + $0x150] sm:$0xff] %v1206
        %1463 = vst [vmem:[%s137 + $0x158] sm:$0xff] %v1207
        %1464 = vst [vmem:[%s137 + $0x160] sm:$0xff] %v1208
        %1465 = vst [vmem:[%s137 + $0x168] sm:$0xff] %v1209
        %1466 = vst [vmem:[%s137 + $0x170] sm:$0xff] %v1210
        %1467 = vst [vmem:[%s137 + $0x178] sm:$0xff] %v1211
        %1468 = vst [vmem:[%s137 + $0x180] sm:$0xff] %v1212
        %1469 = vst [vmem:[%s137 + $0x188] sm:$0xff] %v1213
        %1470 = vst [vmem:[%s137 + $0x190] sm:$0xff] %v1214
        %1471 = vst [vmem:[%s137 + $0x198] sm:$0xff] %v1215
        %1472 = vst [vmem:[%s137 + $0x1a0] sm:$0xff] %v1216
        %1473 = vst [vmem:[%s137 + $0x1a8] sm:$0xff] %v1217
        %1474 = vst [vmem:[%s137 + $0x1b0] sm:$0xff] %v1218
        %1475 = vst [vmem:[%s137 + $0x1b8] sm:$0xff] %v1219
        %1476 = vst [vmem:[%s137 + $0x1c0] sm:$0xff] %v1220
        %1477 = vst [vmem:[%s137 + $0x1c8] sm:$0xff] %v1221
        %1478 = vst [vmem:[%s137 + $0x1d0] sm:$0xff] %v1222
        %1479 = vst [vmem:[%s137 + $0x1d8] sm:$0xff] %v1223
        %1480 = vst [vmem:[%s137 + $0x1e0] sm:$0xff] %v1224
        %1481 = vst [vmem:[%s137 + $0x1e8] sm:$0xff] %v1225
        %1482 = vst [vmem:[%s137 + $0x1f0] sm:$0xff] %v1226
        %1483 = vst [vmem:[%s137 + $0x1f8] sm:$0xff] %v1227
        %1484 = vst [vmem:[%s137 + $0x200] sm:$0xff] %v1228
        %1485 = vst [vmem:[%s137 + $0x208] sm:$0xff] %v1229
        %1486 = vst [vmem:[%s137 + $0x210] sm:$0xff] %v1230
        %1487 = vst [vmem:[%s137 + $0x218] sm:$0xff] %v1231
        %1488 = vst [vmem:[%s137 + $0x220] sm:$0xff] %v1232
        %1489 = vst [vmem:[%s137 + $0x228] sm:$0xff] %v1233
        %1490 = vst [vmem:[%s137 + $0x230] sm:$0xff] %v1234
        %1491 = vst [vmem:[%s137 + $0x238] sm:$0xff] %v1235
        %1492 = vst [vmem:[%s137 + $0x240] sm:$0xff] %v1236
        %1493 = vst [vmem:[%s137 + $0x248] sm:$0xff] %v1237
        %1494 = vst [vmem:[%s137 + $0x250] sm:$0xff] %v1238
        %1495 = vst [vmem:[%s137 + $0x258] sm:$0xff] %v1239
        %1496 = vst [vmem:[%s137 + $0x260] sm:$0xff] %v1240
        %1497 = vst [vmem:[%s137 + $0x268] sm:$0xff] %v1241
        %1498 = vst [vmem:[%s137 + $0x270] sm:$0xff] %v1242
        %1499 = vst [vmem:[%s137 + $0x278] sm:$0xff] %v1243
        %1500 = vst [vmem:[%s137 + $0x280] sm:$0xff] %v1244
        %1501 = vst [vmem:[%s137 + $0x288] sm:$0xff] %v1245
        %1502 = vst [vmem:[%s137 + $0x290] sm:$0xff] %v1246
        %1503 = vst [vmem:[%s137 + $0x298] sm:$0xff] %v1247
        %1504 = vst [vmem:[%s137 + $0x2a0] sm:$0xff] %v1248
        %1505 = vst [vmem:[%s137 + $0x2a8] sm:$0xff] %v1249
        %1506 = vst [vmem:[%s137 + $0x2b0] sm:$0xff] %v1250
        %1507 = vst [vmem:[%s137 + $0x2b8] sm:$0xff] %v1251
        %1508 = vst [vmem:[%s137 + $0x2c0] sm:$0xff] %v1252
        %1509 = vst [vmem:[%s137 + $0x2c8] sm:$0xff] %v1253
        %1510 = vst [vmem:[%s137 + $0x2d0] sm:$0xff] %v1254
        %1511 = vst [vmem:[%s137 + $0x2d8] sm:$0xff] %v1255
        %1512 = vst [vmem:[%s137 + $0x2e0] sm:$0xff] %v1256
        %1513 = vst [vmem:[%s137 + $0x2e8] sm:$0xff] %v1257
        %1514 = vst [vmem:[%s137 + $0x2f0] sm:$0xff] %v1258
        %1515 = vst [vmem:[%s137 + $0x2f8] sm:$0xff] %v1259
        %1516 = vst [vmem:[%s137 + $0x300] sm:$0xff] %v1260
        %1517 = vst [vmem:[%s137 + $0x308] sm:$0xff] %v1261
        %1518 = vst [vmem:[%s137 + $0x310] sm:$0xff] %v1262
        %1519 = vst [vmem:[%s137 + $0x318] sm:$0xff] %v1263
        %1520 = vst [vmem:[%s137 + $0x320] sm:$0xff] %v1264
        %1521 = vst [vmem:[%s137 + $0x328] sm:$0xff] %v1265
        %1522 = vst [vmem:[%s137 + $0x330] sm:$0xff] %v1266
        %1523 = vst [vmem:[%s137 + $0x338] sm:$0xff] %v1267
        %1524 = vst [vmem:[%s137 + $0x340] sm:$0xff] %v1268
        %1525 = vst [vmem:[%s137 + $0x348] sm:$0xff] %v1269
        %1526 = vst [vmem:[%s137 + $0x350] sm:$0xff] %v1270
        %1527 = vst [vmem:[%s137 + $0x358] sm:$0xff] %v1271
        %1528 = vst [vmem:[%s137 + $0x360] sm:$0xff] %v1272
        %1529 = vst [vmem:[%s137 + $0x368] sm:$0xff] %v1273
        %1530 = vst [vmem:[%s137 + $0x370] sm:$0xff] %v1274
        %1531 = vst [vmem:[%s137 + $0x378] sm:$0xff] %v1275
        %1532 = vst [vmem:[%s137 + $0x380] sm:$0xff] %v1276
        %1533 = vst [vmem:[%s137 + $0x388] sm:$0xff] %v1277
        %1534 = vst [vmem:[%s137 + $0x390] sm:$0xff] %v1278
        %1535 = vst [vmem:[%s137 + $0x398] sm:$0xff] %v1279
        %1536 = vst [vmem:[%s137 + $0x3a0] sm:$0xff] %v1280
        %1537 = vst [vmem:[%s137 + $0x3a8] sm:$0xff] %v1281
        %1538 = vst [vmem:[%s137 + $0x3b0] sm:$0xff] %v1282
        %1539 = vst [vmem:[%s137 + $0x3b8] sm:$0xff] %v1283
        %1540 = vst [vmem:[%s137 + $0x3c0] sm:$0xff] %v1284
        %1541 = vst [vmem:[%s137 + $0x3c8] sm:$0xff] %v1285
        %1542 = vst [vmem:[%s137 + $0x3d0] sm:$0xff] %v1286
        %1543 = vst [vmem:[%s137 + $0x3d8] sm:$0xff] %v1287
        %1544 = vst [vmem:[%s137 + $0x3e0] sm:$0xff] %v1288
        %1545 = vst [vmem:[%s137 + $0x3e8] sm:$0xff] %v1289
        %1546 = vst [vmem:[%s137 + $0x3f0] sm:$0xff] %v1290
        %1547 = vst [vmem:[%s137 + $0x3f8] sm:$0xff] %v1291
        %1548 = vst [vmem:[%s137 + $0x400] sm:$0xff] %v1292
        %1549 = vst [vmem:[%s137 + $0x408] sm:$0xff] %v1293
        %1550 = vst [vmem:[%s137 + $0x410] sm:$0xff] %v1294
        %1551 = vst [vmem:[%s137 + $0x418] sm:$0xff] %v1295
        %1552 = vst [vmem:[%s137 + $0x420] sm:$0xff] %v1296
        %1553 = vst [vmem:[%s137 + $0x428] sm:$0xff] %v1297
        %1554 = vst [vmem:[%s137 + $0x430] sm:$0xff] %v1298
        %1555 = vst [vmem:[%s137 + $0x438] sm:$0xff] %v1299
        %1556 = vst [vmem:[%s137 + $0x440] sm:$0xff] %v1300
        %1557 = vst [vmem:[%s137 + $0x448] sm:$0xff] %v1301
        %1558 = vst [vmem:[%s137 + $0x450] sm:$0xff] %v1302
        %1559 = vst [vmem:[%s137 + $0x458] sm:$0xff] %v1303
        %1560 = vst [vmem:[%s137 + $0x460] sm:$0xff] %v1304
        %1561 = vst [vmem:[%s137 + $0x468] sm:$0xff] %v1305
        %1562 = vst [vmem:[%s137 + $0x470] sm:$0xff] %v1306
        %1563 = vst [vmem:[%s137 + $0x478] sm:$0xff] %v1307
        %1564 = vst [vmem:[%s137 + $0x480] sm:$0xff] %v1308
        %1565 = vst [vmem:[%s137 + $0x488] sm:$0xff] %v1309
        %1566 = vst [vmem:[%s137 + $0x490] sm:$0xff] %v1310
        %1567 = vst [vmem:[%s137 + $0x498] sm:$0xff] %v1311
        %1568 = vst [vmem:[%s137 + $0x4a0] sm:$0xff] %v1312
        %1569 = vst [vmem:[%s137 + $0x4a8] sm:$0xff] %v1313
        %1570 = vst [vmem:[%s137 + $0x4b0] sm:$0xff] %v1314
        %1571 = vst [vmem:[%s137 + $0x4b8] sm:$0xff] %v1315
        %1572 = vst [vmem:[%s137 + $0x4c0] sm:$0xff] %v1316
        %1573 = vst [vmem:[%s137 + $0x4c8] sm:$0xff] %v1317
        %1574 = vst [vmem:[%s137 + $0x4d0] sm:$0xff] %v1318
        %1575 = vst [vmem:[%s137 + $0x4d8] sm:$0xff] %v1319
        %1576 = vst [vmem:[%s137 + $0x4e0] sm:$0xff] %v1320
        %1577 = vst [vmem:[%s137 + $0x4e8] sm:$0xff] %v1321
        %1578 = vst [vmem:[%s137 + $0x4f0] sm:$0xff] %v1322
        %1579 = vst [vmem:[%s137 + $0x4f8] sm:$0xff] %v1323
        %1580 = vst [vmem:[%s137 + $0x500] sm:$0xff] %v1324
        %1581 = vst [vmem:[%s137 + $0x508] sm:$0xff] %v1325
        %1582 = vst [vmem:[%s137 + $0x510] sm:$0xff] %v1326
        %1583 = vst [vmem:[%s137 + $0x518] sm:$0xff] %v1327
        %1584 = vst [vmem:[%s137 + $0x520] sm:$0xff] %v1328
        %1585 = vst [vmem:[%s137 + $0x528] sm:$0xff] %v1329
        %1586 = vst [vmem:[%s137 + $0x530] sm:$0xff] %v1330
        %1587 = vst [vmem:[%s137 + $0x538] sm:$0xff] %v1331
        %1588 = vst [vmem:[%s137 + $0x540] sm:$0xff] %v1332
        %1589 = vst [vmem:[%s137 + $0x548] sm:$0xff] %v1333
        %1590 = vst [vmem:[%s137 + $0x550] sm:$0xff] %v1334
        %1591 = vst [vmem:[%s137 + $0x558] sm:$0xff] %v1335
        %1592 = vst [vmem:[%s137 + $0x560] sm:$0xff] %v1336
        %1593 = vst [vmem:[%s137 + $0x568] sm:$0xff] %v1337
        %1594 = vst [vmem:[%s137 + $0x570] sm:$0xff] %v1338
        %1595 = vst [vmem:[%s137 + $0x578] sm:$0xff] %v1339
        %1596 = vst [vmem:[%s137 + $0x580] sm:$0xff] %v1340
        %1597 = vst [vmem:[%s137 + $0x588] sm:$0xff] %v1341
        %1598 = vst [vmem:[%s137 + $0x590] sm:$0xff] %v1342
        %1599 = vst [vmem:[%s137 + $0x598] sm:$0xff] %v1343
        %1600 = vst [vmem:[%s137 + $0x5a0] sm:$0xff] %v1344
        %1601 = vst [vmem:[%s137 + $0x5a8] sm:$0xff] %v1345
        %1602 = vst [vmem:[%s137 + $0x5b0] sm:$0xff] %v1346
        %1603 = vst [vmem:[%s137 + $0x5b8] sm:$0xff] %v1347
        %1604 = vst [vmem:[%s137 + $0x5c0] sm:$0xff] %v1348
        %1605 = vst [vmem:[%s137 + $0x5c8] sm:$0xff] %v1349
        %1606 = vst [vmem:[%s137 + $0x5d0] sm:$0xff] %v1350
        %1607 = vst [vmem:[%s137 + $0x5d8] sm:$0xff] %v1351
        %1608 = vst [vmem:[%s137 + $0x5e0] sm:$0xff] %v1352
        %1609 = vst [vmem:[%s137 + $0x5e8] sm:$0xff] %v1353
        %1610 = vst [vmem:[%s137 + $0x5f0] sm:$0xff] %v1354
        %1611 = vst [vmem:[%s137 + $0x5f8] sm:$0xff] %v1355
        %1612 = vst [vmem:[%s137 + $0x600] sm:$0xff] %v1356
        %1613 = vst [vmem:[%s137 + $0x608] sm:$0xff] %v1357
        %1614 = vst [vmem:[%s137 + $0x610] sm:$0xff] %v1358
        %1615 = vst [vmem:[%s137 + $0x618] sm:$0xff] %v1359
        %1616 = vst [vmem:[%s137 + $0x620] sm:$0xff] %v1360
        %1617 = vst [vmem:[%s137 + $0x628] sm:$0xff] %v1361
        %1618 = vst [vmem:[%s137 + $0x630] sm:$0xff] %v1362
        %1619 = vst [vmem:[%s137 + $0x638] sm:$0xff] %v1363
        %1620 = vst [vmem:[%s137 + $0x640] sm:$0xff] %v1364
        %1621 = vst [vmem:[%s137 + $0x648] sm:$0xff] %v1365
        %1622 = vst [vmem:[%s137 + $0x650] sm:$0xff] %v1366
        %1623 = vst [vmem:[%s137 + $0x658] sm:$0xff] %v1367
        %1624 = vst [vmem:[%s137 + $0x660] sm:$0xff] %v1368
        %1625 = vst [vmem:[%s137 + $0x668] sm:$0xff] %v1369
        %1626 = vst [vmem:[%s137 + $0x670] sm:$0xff] %v1370
        %1627 = vst [vmem:[%s137 + $0x678] sm:$0xff] %v1371
        %1628 = vst [vmem:[%s137 + $0x680] sm:$0xff] %v1372
        %1629 = vst [vmem:[%s137 + $0x688] sm:$0xff] %v1373
        %1630 = vst [vmem:[%s137 + $0x690] sm:$0xff] %v1374
        %1631 = vst [vmem:[%s137 + $0x698] sm:$0xff] %v1375
        %1632 = vst [vmem:[%s137 + $0x6a0] sm:$0xff] %v1376
        %1633 = vst [vmem:[%s137 + $0x6a8] sm:$0xff] %v1377
        %1634 = vst [vmem:[%s137 + $0x6b0] sm:$0xff] %v1378
        %1635 = vst [vmem:[%s137 + $0x6b8] sm:$0xff] %v1379
        %1636 = vst [vmem:[%s137 + $0x6c0] sm:$0xff] %v1380
        %1637 = vst [vmem:[%s137 + $0x6c8] sm:$0xff] %v1381
        %1638 = vst [vmem:[%s137 + $0x6d0] sm:$0xff] %v1382
        %1639 = vst [vmem:[%s137 + $0x6d8] sm:$0xff] %v1383
        %1640 = vst [vmem:[%s137 + $0x6e0] sm:$0xff] %v1384
        %1641 = vst [vmem:[%s137 + $0x6e8] sm:$0xff] %v1385
        %1642 = vst [vmem:[%s137 + $0x6f0] sm:$0xff] %v1386
        %1643 = vst [vmem:[%s137 + $0x6f8] sm:$0xff] %v1387
        %1644 = vst [vmem:[%s137 + $0x700] sm:$0xff] %v1388
        %1645 = vst [vmem:[%s137 + $0x708] sm:$0xff] %v1389
        %1646 = vst [vmem:[%s137 + $0x710] sm:$0xff] %v1390
        %1647 = vst [vmem:[%s137 + $0x718] sm:$0xff] %v1391
        %1648 = vst [vmem:[%s137 + $0x720] sm:$0xff] %v1392
        %1649 = vst [vmem:[%s137 + $0x728] sm:$0xff] %v1393
        %1650 = vst [vmem:[%s137 + $0x730] sm:$0xff] %v1394
        %1651 = vst [vmem:[%s137 + $0x738] sm:$0xff] %v1395
        %1652 = vst [vmem:[%s137 + $0x740] sm:$0xff] %v1396
        %1653 = vst [vmem:[%s137 + $0x748] sm:$0xff] %v1397
        %1654 = vst [vmem:[%s137 + $0x750] sm:$0xff] %v1398
        %1655 = vst [vmem:[%s137 + $0x758] sm:$0xff] %v1399
        %1656 = vst [vmem:[%s137 + $0x760] sm:$0xff] %v1400
        %1657 = vst [vmem:[%s137 + $0x768] sm:$0xff] %v1401
        %1658 = vst [vmem:[%s137 + $0x770] sm:$0xff] %v1402
        %1659 = vst [vmem:[%s137 + $0x778] sm:$0xff] %v1403
        %1660 = vst [vmem:[%s137 + $0x780] sm:$0xff] %v1404
        %1661 = vst [vmem:[%s137 + $0x788] sm:$0xff] %v1405
        %1662 = vst [vmem:[%s137 + $0x790] sm:$0xff] %v1406
        %1663 = vst [vmem:[%s137 + $0x798] sm:$0xff] %v1407
        %1664 = vst [vmem:[%s137 + $0x7a0] sm:$0xff] %v1408
        %1665 = vst [vmem:[%s137 + $0x7a8] sm:$0xff] %v1409
        %1666 = vst [vmem:[%s137 + $0x7b0] sm:$0xff] %v1410
        %1667 = vst [vmem:[%s137 + $0x7b8] sm:$0xff] %v1411
        %1668 = vst [vmem:[%s137 + $0x7c0] sm:$0xff] %v1412
        %1669 = vst [vmem:[%s137 + $0x7c8] sm:$0xff] %v1413
        %1670 = vst [vmem:[%s137 + $0x7d0] sm:$0xff] %v1414
        %1671 = vst [vmem:[%s137 + $0x7d8] sm:$0xff] %v1415
        %1672 = vst [vmem:[%s137 + $0x7e0] sm:$0xff] %v1416
        %1673 = vst [vmem:[%s137 + $0x7e8] sm:$0xff] %v1417
        %1674 = vst [vmem:[%s137 + $0x7f0] sm:$0xff] %v1418
        %1675 = vst [vmem:[%s137 + $0x7f8] sm:$0xff] %v1419
        %s1676 = sand.u32 %s52, 1
        %s1677 = scalar_lea.sflag [#allocation4], %s1676
        %s1678 = sand.u32 %s52, 1
        %s1679 = smul.addr %s1678, 2048
        %s1680 = scalar_lea.vmem [#allocation5], %s1679
        // Predicated region
        $region29: #{tpu_custom_call.1} parent=23 // pred_check
          %p1681 = pneg %p62
        $region30: #{tpu_custom_call.1} parent=23 // pred_check_branch
          %1683 = sbr.rel (%p1681) target = $region32
        $region31: #{tpu_custom_call.1} parent=23 // pred_region
          %s1684 = smul.u32 8, %s18
          %1686 = vsyncadd %s1677, 0
          %s1687 = smul.addr %s1684, 32
          %s1688 = smul.addr %s1687, 8
          %s1689 = scalar_lea.hbm %s1, %s1688
          %s1690 = sshll.u32 %s1680, 4
          %s1691 = int_to_ptr.vmem [resolvable:$true] %s1690
          %s1692 = sshll.u32 %s1689, 4
          %s1693 = int_to_ptr.hbm [resolvable:$true] %s1692
          %1698 = dma.vmem_to_hbm [thread:$0]  %s1691, 32768, %s1693, %s1677, 4096, 4096, 256
        $region32: #{tpu_custom_call.1} parent=23 // pred_fallthru
          _
      $region24: #{tpu_custom_call.1} parent=5 // pred_fallthru
        _
      %p1699 = scmp.le.s32.totalorder 2, %s13
      // Predicated region
      $region33: #{tpu_custom_call.1} parent=5 // pred_check
        %p1700 = pneg %p1699
      $region34: #{tpu_custom_call.1} parent=5 // pred_check_branch
        %1702 = sbr.rel (%p1700) target = $region36
      $region35: #{tpu_custom_call.1} parent=5 // pred_region
        %s1703 = ssub.s32 %s13, 2
        // Predicated region
        $region37: #{tpu_custom_call.1} parent=35 // pred_check
          %p1704 = pneg %p68
        $region38: #{tpu_custom_call.1} parent=35 // pred_check_branch
          %1706 = sbr.rel (%p1704) target = $region40
        $region39: #{tpu_custom_call.1} parent=35 // pred_region
          %s1707 = sand.u32 %s53, 1
          %s1708 = scalar_lea.sflag [#allocation4], %s1707
          %s1709 = sand.u32 %s53, 1
          %s1710 = smul.addr %s1709, 2048
          %s1711 = scalar_lea.vmem [#allocation5], %s1710
          %1713 = dma.done %s1708, 32768
        $region40: #{tpu_custom_call.1} parent=35 // pred_fallthru
          _
      $region36: #{tpu_custom_call.1} parent=5 // pred_fallthru
        _
    $region6: #{tpu_custom_call.1} parent=1 // loop_footer
      %s17 = sadd.s32 1, %s13
    $region7: #{tpu_custom_call.1} parent=1 // loop_footer_branch
      %12 = sbr.rel target = $region3
    $region8: #{tpu_custom_call.1} parent=1 // loop_exit
      _
    %1714 = vsyncpa [#allocation3], 1
    %s1715 = scalar_lea.sflag [#allocation3], 1
    %1716 = vsyncpa %s1715, 1
    %1717 = vsyncpa [#allocation4], 1
    %s1718 = scalar_lea.sflag [#allocation4], 1
    %1719 = vsyncpa %s1718, 1

</llo_original>
